<compile_context>
chip_gen: v7x
topology: tpu7x:2x2x1
jax: 0.10.0
libtpu: 0.0.40
codegen_flags: <defaults>
</compile_context>

<pallas_src>
import functools

import jax
import jax.numpy as jnp
from jax.experimental import pallas as pl
from jax.experimental.pallas import tpu as pltpu


def _stanosa_kernel(x_ref, we_ref, be_ref, wd_ref, bd_ref, enc_ref, rec_ref):
    # x_ref: (tm, Dp) bf16 row tile of flattened sub-patches.
    # Encoder (ZCA already folded into we/be): bf16 operands, f32 accumulate.
    pre = jnp.dot(x_ref[...], we_ref[...],
                  preferred_element_type=jnp.float32) + be_ref[...]
    enc = jnp.tanh(pre)                                        # f32 on VPU/EUP
    # Decoder: bf16 operands, f32 accumulate, f32 bias add.
    rec = jnp.dot(enc.astype(wd_ref.dtype), wd_ref[...],
                  preferred_element_type=jnp.float32) + bd_ref[...]
    enc_ref[...] = enc.astype(enc_ref.dtype)
    rec_ref[...] = rec.astype(rec_ref.dtype)


def _round_up(x, m):
    return ((x + m - 1) // m) * m


def _pad_to(a, shape):
    pads = [(0, t - s) for s, t in zip(a.shape, shape)]
    if all(p == (0, 0) for p in pads):
        return a
    return jnp.pad(a, pads)


@functools.partial(jax.jit, static_argnames=("tm", "single_buffer_consts"))
def stanosa_forward(x, zca_mean, zca_components, w_enc, b_enc, w_dec, b_dec,
                    *, tm=256, single_buffer_consts=True):
    """StaNoSA forward pass.

    x: [batch, patches, features, width, height] float32
    returns (encoded [(b*p), hidden], reconstructed [b, p, f, w, h])
    """
    b, p, f, w, h = x.shape
    n = b * p
    d = f * w * h
    hidden = w_enc.shape[1]

    # ---- Fold ZCA whitening into the encoder (exact, done once in f32). ----
    cw = zca_components.astype(jnp.float32) @ w_enc.astype(jnp.float32)  # (d, hidden)
    b_enc_f = b_enc.astype(jnp.float32) - zca_mean.astype(jnp.float32) @ cw

    # ---- Lane/sublane-friendly padding (rows to tm, cols to 128). ----
    n_pad = _round_up(n, tm)
    d_pad = _round_up(d, 128)
    h_pad = _round_up(hidden, 128)

    x_bf = _pad_to(x.reshape(n, d).astype(jnp.float32),
                   (n_pad, d_pad)).astype(jnp.bfloat16)
    we = _pad_to(cw, (d_pad, h_pad)).astype(jnp.bfloat16)
    be = _pad_to(b_enc_f.reshape(1, hidden), (1, h_pad))                 # f32
    wd = _pad_to(w_dec.astype(jnp.float32),
                 (h_pad, d_pad)).astype(jnp.bfloat16)
    bd = _pad_to(b_dec.astype(jnp.float32).reshape(1, d), (1, d_pad))    # f32

    def _const_spec(shape):
        kwargs = {}
        if single_buffer_consts:
            # Constant across the grid -> no need to double-buffer in VMEM.
            kwargs["pipeline_mode"] = pl.Buffered(1)
        return pl.BlockSpec(shape, lambda i: (0, 0), **kwargs)

    grid = (n_pad // tm,)
    enc, rec = pl.pallas_call(
        _stanosa_kernel,
        out_shape=(
            jax.ShapeDtypeStruct((n_pad, h_pad), jnp.float32),
            jax.ShapeDtypeStruct((n_pad, d_pad), jnp.float32),
        ),
        grid_spec=pltpu.PrefetchScalarGridSpec(
            num_scalar_prefetch=0,
            grid=grid,
            in_specs=[
                pl.BlockSpec((tm, d_pad), lambda i: (i, 0)),  # x row tile
                _const_spec((d_pad, h_pad)),                  # folded encoder W
                _const_spec((1, h_pad)),                      # folded encoder b
                _const_spec((h_pad, d_pad)),                  # decoder W
                _const_spec((1, d_pad)),                      # decoder b
            ],
            out_specs=[
                pl.BlockSpec((tm, h_pad), lambda i: (i, 0)),  # encoded
                pl.BlockSpec((tm, d_pad), lambda i: (i, 0)),  # reconstructed
            ],
        ),
        compiler_params=pltpu.CompilerParams(
            dimension_semantics=("parallel",)),
    )(x_bf, we, be, wd, bd)

    enc = enc[:n, :hidden]
    rec = rec[:n, :d].reshape(b, p, f, w, h)
    return enc, rec


def _reference_forward(x, zca_mean, zca_components, w_enc, b_enc, w_dec, b_dec):
    b, p, f, w, h = x.shape
    x_flat = x.reshape(b * p, f * w * h)
    xw = (x_flat - zca_mean[None, :]) @ zca_components
    enc = jnp.tanh(xw @ w_enc + b_enc[None, :])
    rec = enc @ w_dec + b_dec[None, :]
    return enc, rec.reshape(b, p, f, w, h)


if __name__ == "__main__":
    # Small shapes consistent with the module: channels=2, 8x8 sub-patches
    # -> flattened D = 128; enough rows (b*p=512) for a 2-step parallel grid.
    B, P, F, W, H = 8, 64, 2, 8, 8
    D = F * W * H
    HID = 64

    key = jax.random.PRNGKey(0)
    kx, km, kc, kwe, kbe, kwd, kbd = jax.random.split(key, 7)

    x = jax.random.normal(kx, (B, P, F, W, H), dtype=jnp.float32)

    # Deterministic synthetic ZCA statistics (identity-ish rotation + mean).
    zca_mean = 0.1 * jax.random.normal(km, (D,), dtype=jnp.float32)
    zca_components = (jnp.eye(D, dtype=jnp.float32)
                      + 0.01 * jax.random.normal(kc, (D, D), dtype=jnp.float32))

    # Deterministic autoencoder parameters.
    w_enc = 0.05 * jax.random.normal(kwe, (D, HID), dtype=jnp.float32)
    b_enc = 0.01 * jax.random.normal(kbe, (HID,), dtype=jnp.float32)
    w_dec = 0.05 * jax.random.normal(kwd, (HID, D), dtype=jnp.float32)
    b_dec = 0.01 * jax.random.normal(kbd, (D,), dtype=jnp.float32)

    try:
        enc, rec = stanosa_forward(x, zca_mean, zca_components,
                                   w_enc, b_enc, w_dec, b_dec)
        jax.block_until_ready((enc, rec))
    except Exception:
        # Fallback if this Pallas build rejects single-buffered constants.
        enc, rec = stanosa_forward(x, zca_mean, zca_components,
                                   w_enc, b_enc, w_dec, b_dec,
                                   single_buffer_consts=False)
        jax.block_until_ready((enc, rec))

    enc_ref, rec_ref = _reference_forward(x, zca_mean, zca_components,
                                          w_enc, b_enc, w_dec, b_dec)
    assert enc.shape == (B * P, HID)
    assert rec.shape == (B, P, F, W, H)
    # bf16 matmul operands with f32 accumulation -> slightly loose tolerance.
    assert jnp.allclose(enc, enc_ref, atol=3e-2, rtol=3e-2)
    assert jnp.allclose(rec, rec_ref, atol=3e-2, rtol=3e-2)

    print("KERNEL_OK")
</pallas_src>

<mosaic_0001>
module attributes {stable_mosaic.version = 11 : i64} {
  func.func @_stanosa_kernel(%arg0: i32, %arg1: memref<256x128xbf16, #tpu.memory_space<vmem>>, %arg2: memref<128x128xbf16, #tpu.memory_space<vmem>>, %arg3: memref<1x128xf32, #tpu.memory_space<vmem>>, %arg4: memref<128x128xbf16, #tpu.memory_space<vmem>>, %arg5: memref<1x128xf32, #tpu.memory_space<vmem>>, %arg6: memref<256x128xf32, #tpu.memory_space<vmem>>, %arg7: memref<256x128xf32, #tpu.memory_space<vmem>>) attributes {dimension_semantics = [#tpu.dimension_semantics<parallel>], iteration_bounds = array<i64: 2>, scalar_prefetch = 0 : i64, scratch_operands = 0 : i64, tpu.core_type = #tpu.core_type<tc>, window_params = [{transform_indices = @transform_0, window_bounds = array<i64: 256, 128>}, {pipeline_mode = #tpu.pipeline_mode<synchronous>, transform_indices = @transform_1, window_bounds = array<i64: 128, 128>}, {pipeline_mode = #tpu.pipeline_mode<synchronous>, transform_indices = @transform_2, window_bounds = array<i64: 1, 128>}, {pipeline_mode = #tpu.pipeline_mode<synchronous>, transform_indices = @transform_3, window_bounds = array<i64: 128, 128>}, {pipeline_mode = #tpu.pipeline_mode<synchronous>, transform_indices = @transform_4, window_bounds = array<i64: 1, 128>}, {transform_indices = @transform_5, window_bounds = array<i64: 256, 128>}, {transform_indices = @transform_6, window_bounds = array<i64: 256, 128>}]} {
    %c0 = arith.constant 0 : index
    %c0_0 = arith.constant 0 : index
    %0 = vector.load %arg1[%c0, %c0_0] : memref<256x128xbf16, #tpu.memory_space<vmem>>, vector<256x128xbf16>
    %c0_1 = arith.constant 0 : index
    %c0_2 = arith.constant 0 : index
    %1 = vector.load %arg2[%c0_1, %c0_2] : memref<128x128xbf16, #tpu.memory_space<vmem>>, vector<128x128xbf16>
    %cst = arith.constant dense<0.000000e+00> : vector<256x128xf32>
    %2 = tpu.matmul %0, %1, %cst {dimension_numbers = #tpu.dot_dimension_numbers<[1], [0], [0], [1], [0, 0, 1, 1], [], []>} : vector<256x128xbf16>, vector<128x128xbf16>, vector<256x128xf32> -> vector<256x128xf32>
    %c0_3 = arith.constant 0 : index
    %c0_4 = arith.constant 0 : index
    %3 = vector.load %arg3[%c0_3, %c0_4] : memref<1x128xf32, #tpu.memory_space<vmem>>, vector<1x128xf32>
    %4 = vector.broadcast %3 : vector<1x128xf32> to vector<256x128xf32>
    %5 = arith.addf %2, %4 : vector<256x128xf32>
    %6 = math.tanh %5 : vector<256x128xf32>
    %7 = arith.truncf %6 : vector<256x128xf32> to vector<256x128xbf16>
    %c0_5 = arith.constant 0 : index
    %c0_6 = arith.constant 0 : index
    %8 = vector.load %arg4[%c0_5, %c0_6] : memref<128x128xbf16, #tpu.memory_space<vmem>>, vector<128x128xbf16>
    %cst_7 = arith.constant dense<0.000000e+00> : vector<256x128xf32>
    %9 = tpu.matmul %7, %8, %cst_7 {dimension_numbers = #tpu.dot_dimension_numbers<[1], [0], [0], [1], [0, 0, 1, 1], [], []>} : vector<256x128xbf16>, vector<128x128xbf16>, vector<256x128xf32> -> vector<256x128xf32>
    %c0_8 = arith.constant 0 : index
    %c0_9 = arith.constant 0 : index
    %10 = vector.load %arg5[%c0_8, %c0_9] : memref<1x128xf32, #tpu.memory_space<vmem>>, vector<1x128xf32>
    %11 = vector.broadcast %10 : vector<1x128xf32> to vector<256x128xf32>
    %12 = arith.addf %9, %11 : vector<256x128xf32>
    %c0_10 = arith.constant 0 : index
    %c0_11 = arith.constant 0 : index
    %13 = vector.load %arg6[%c0_10, %c0_11] : memref<256x128xf32, #tpu.memory_space<vmem>>, vector<256x128xf32>
    tpu.vector_store %arg6[%c0_10, %c0_11], %6 {strides = array<i32>} : memref<256x128xf32, #tpu.memory_space<vmem>>, vector<256x128xf32>,
    %c0_12 = arith.constant 0 : index
    %c0_13 = arith.constant 0 : index
    %14 = vector.load %arg7[%c0_12, %c0_13] : memref<256x128xf32, #tpu.memory_space<vmem>>, vector<256x128xf32>
    tpu.vector_store %arg7[%c0_12, %c0_13], %12 {strides = array<i32>} : memref<256x128xf32, #tpu.memory_space<vmem>>, vector<256x128xf32>,
    return
  }
  func.func @transform_0(%arg0: i32) -> (i32, i32) {
    %c0_i32 = arith.constant 0 : i32
    %c0_i32_0 = arith.constant 0 : i32
    return %arg0, %c0_i32 : i32, i32
  }
  func.func @transform_1(%arg0: i32) -> (i32, i32) {
    %c0_i32 = arith.constant 0 : i32
    %c0_i32_0 = arith.constant 0 : i32
    %c0_i32_1 = arith.constant 0 : i32
    return %c0_i32, %c0_i32_0 : i32, i32
  }
  func.func @transform_2(%arg0: i32) -> (i32, i32) {
    %c0_i32 = arith.constant 0 : i32
    %c0_i32_0 = arith.constant 0 : i32
    %c0_i32_1 = arith.constant 0 : i32
    return %c0_i32, %c0_i32_0 : i32, i32
  }
  func.func @transform_3(%arg0: i32) -> (i32, i32) {
    %c0_i32 = arith.constant 0 : i32
    %c0_i32_0 = arith.constant 0 : i32
    %c0_i32_1 = arith.constant 0 : i32
    return %c0_i32, %c0_i32_0 : i32, i32
  }
  func.func @transform_4(%arg0: i32) -> (i32, i32) {
    %c0_i32 = arith.constant 0 : i32
    %c0_i32_0 = arith.constant 0 : i32
    %c0_i32_1 = arith.constant 0 : i32
    return %c0_i32, %c0_i32_0 : i32, i32
  }
  func.func @transform_5(%arg0: i32) -> (i32, i32) {
    %c0_i32 = arith.constant 0 : i32
    %c0_i32_0 = arith.constant 0 : i32
    return %arg0, %c0_i32 : i32, i32
  }
  func.func @transform_6(%arg0: i32) -> (i32, i32) {
    %c0_i32 = arith.constant 0 : i32
    %c0_i32_0 = arith.constant 0 : i32
    return %arg0, %c0_i32 : i32, i32
  }
}

module attributes {stable_mosaic.version = 11 : i64} {
  func.func @_stanosa_kernel(%arg0: i32, %arg1: memref<256x128xbf16, #tpu.memory_space<vmem>>, %arg2: memref<128x128xbf16, #tpu.memory_space<vmem>>, %arg3: memref<1x128xf32, #tpu.memory_space<vmem>>, %arg4: memref<128x128xbf16, #tpu.memory_space<vmem>>, %arg5: memref<1x128xf32, #tpu.memory_space<vmem>>, %arg6: memref<256x128xf32, #tpu.memory_space<vmem>>, %arg7: memref<256x128xf32, #tpu.memory_space<vmem>>) attributes {dimension_semantics = [#tpu.dimension_semantics<parallel>], iteration_bounds = array<i64: 2>, scalar_prefetch = 0 : i64, scratch_operands = 0 : i64, tpu.core_type = #tpu.core_type<tc>, window_params = [{transform_indices = @transform_0, window_bounds = array<i64: 256, 128>}, {pipeline_mode = #tpu.pipeline_mode<synchronous>, transform_indices = @transform_1, window_bounds = array<i64: 128, 128>}, {pipeline_mode = #tpu.pipeline_mode<synchronous>, transform_indices = @transform_2, window_bounds = array<i64: 1, 128>}, {pipeline_mode = #tpu.pipeline_mode<synchronous>, transform_indices = @transform_3, window_bounds = array<i64: 128, 128>}, {pipeline_mode = #tpu.pipeline_mode<synchronous>, transform_indices = @transform_4, window_bounds = array<i64: 1, 128>}, {transform_indices = @transform_5, window_bounds = array<i64: 256, 128>}, {transform_indices = @transform_6, window_bounds = array<i64: 256, 128>}]} {
    %c0 = arith.constant 0 : index
    %c0_0 = arith.constant 0 : index
    %0 = vector.load %arg1[%c0, %c0_0] : memref<256x128xbf16, #tpu.memory_space<vmem>>, vector<256x128xbf16>
    %c0_1 = arith.constant 0 : index
    %c0_2 = arith.constant 0 : index
    %1 = vector.load %arg2[%c0_1, %c0_2] : memref<128x128xbf16, #tpu.memory_space<vmem>>, vector<128x128xbf16>
    %cst = arith.constant dense<0.000000e+00> : vector<256x128xf32>
    %2 = tpu.matmul %0, %1, %cst {dimension_numbers = #tpu.dot_dimension_numbers<[1], [0], [0], [1], [0, 0, 1, 1], [], []>} : vector<256x128xbf16>, vector<128x128xbf16>, vector<256x128xf32> -> vector<256x128xf32>
    %c0_3 = arith.constant 0 : index
    %c0_4 = arith.constant 0 : index
    %3 = vector.load %arg3[%c0_3, %c0_4] : memref<1x128xf32, #tpu.memory_space<vmem>>, vector<1x128xf32>
    %4 = vector.broadcast %3 : vector<1x128xf32> to vector<256x128xf32>
    %5 = arith.addf %2, %4 : vector<256x128xf32>
    %6 = math.tanh %5 : vector<256x128xf32>
    %7 = arith.truncf %6 : vector<256x128xf32> to vector<256x128xbf16>
    %c0_5 = arith.constant 0 : index
    %c0_6 = arith.constant 0 : index
    %8 = vector.load %arg4[%c0_5, %c0_6] : memref<128x128xbf16, #tpu.memory_space<vmem>>, vector<128x128xbf16>
    %cst_7 = arith.constant dense<0.000000e+00> : vector<256x128xf32>
    %9 = tpu.matmul %7, %8, %cst_7 {dimension_numbers = #tpu.dot_dimension_numbers<[1], [0], [0], [1], [0, 0, 1, 1], [], []>} : vector<256x128xbf16>, vector<128x128xbf16>, vector<256x128xf32> -> vector<256x128xf32>
    %c0_8 = arith.constant 0 : index
    %c0_9 = arith.constant 0 : index
    %10 = vector.load %arg5[%c0_8, %c0_9] : memref<1x128xf32, #tpu.memory_space<vmem>>, vector<1x128xf32>
    %11 = vector.broadcast %10 : vector<1x128xf32> to vector<256x128xf32>
    %12 = arith.addf %9, %11 : vector<256x128xf32>
    %c0_10 = arith.constant 0 : index
    %c0_11 = arith.constant 0 : index
    %13 = vector.load %arg6[%c0_10, %c0_11] : memref<256x128xf32, #tpu.memory_space<vmem>>, vector<256x128xf32>
    tpu.vector_store %arg6[%c0_10, %c0_11], %6 {strides = array<i32>} : memref<256x128xf32, #tpu.memory_space<vmem>>, vector<256x128xf32>,
    %c0_12 = arith.constant 0 : index
    %c0_13 = arith.constant 0 : index
    %14 = vector.load %arg7[%c0_12, %c0_13] : memref<256x128xf32, #tpu.memory_space<vmem>>, vector<256x128xf32>
    tpu.vector_store %arg7[%c0_12, %c0_13], %12 {strides = array<i32>} : memref<256x128xf32, #tpu.memory_space<vmem>>, vector<256x128xf32>,
    return
  }
  func.func @transform_0(%arg0: i32) -> (i32, i32) {
    %c0_i32 = arith.constant 0 : i32
    %c0_i32_0 = arith.constant 0 : i32
    return %arg0, %c0_i32 : i32, i32
  }
  func.func @transform_1(%arg0: i32) -> (i32, i32) {
    %c0_i32 = arith.constant 0 : i32
    %c0_i32_0 = arith.constant 0 : i32
    %c0_i32_1 = arith.constant 0 : i32
    return %c0_i32, %c0_i32_0 : i32, i32
  }
  func.func @transform_2(%arg0: i32) -> (i32, i32) {
    %c0_i32 = arith.constant 0 : i32
    %c0_i32_0 = arith.constant 0 : i32
    %c0_i32_1 = arith.constant 0 : i32
    return %c0_i32, %c0_i32_0 : i32, i32
  }
  func.func @transform_3(%arg0: i32) -> (i32, i32) {
    %c0_i32 = arith.constant 0 : i32
    %c0_i32_0 = arith.constant 0 : i32
    %c0_i32_1 = arith.constant 0 : i32
    return %c0_i32, %c0_i32_0 : i32, i32
  }
  func.func @transform_4(%arg0: i32) -> (i32, i32) {
    %c0_i32 = arith.constant 0 : i32
    %c0_i32_0 = arith.constant 0 : i32
    %c0_i32_1 = arith.constant 0 : i32
    return %c0_i32, %c0_i32_0 : i32, i32
  }
  func.func @transform_5(%arg0: i32) -> (i32, i32) {
    %c0_i32 = arith.constant 0 : i32
    %c0_i32_0 = arith.constant 0 : i32
    return %arg0, %c0_i32 : i32, i32
  }
  func.func @transform_6(%arg0: i32) -> (i32, i32) {
    %c0_i32 = arith.constant 0 : i32
    %c0_i32_0 = arith.constant 0 : i32
    return %arg0, %c0_i32 : i32, i32
  }
}

</mosaic_0001>

<llo_original>
// kernel: stanosa_forward.1
$region0: #{stanosa_forward.1}
  #allocation0 [shape = 'u32[]', space=smem, size = 0x4, offset = 0x4, fixed_abs, tag = 'smem constant byte address 0x4 - core index']
  #allocation1 [shape = 'u32[144,128]{1,0:T(1,128)}', space=vmem, size = 0x12000, scoped, tag = 'internal scratch']
  %s0 = inlined_call_operand.vmem [shape: bf16[512,128], index: 0, kind: input, shape index: {}]
  %s1 = inlined_call_operand.vmem [shape: bf16[128,128], index: 1, kind: input, shape index: {}]
  %s2 = inlined_call_operand.vmem [shape: f32[1,128], index: 2, kind: input, shape index: {}]
  %s3 = inlined_call_operand.vmem [shape: bf16[128,128], index: 3, kind: input, shape index: {}]
  %s4 = inlined_call_operand.vmem [shape: f32[1,128], index: 4, kind: input, shape index: {}]
  %s5 = inlined_call_operand.vmem [shape: f32[512,128], index: 5, kind: output, shape index: {0}]
  %s6 = inlined_call_operand.vmem [shape: f32[512,128], index: 6, kind: output, shape index: {1}]
  %7 = xla_tuple %s5, %s6
  %s8 = sld [smem:[#allocation0]]
  $region61: #{stanosa_forward.1} parent=0
    _
  %s10 = ssub.s32 1, %s8
  %s11 = scalar_select 0, %s10, %s8
  loop: start=0, step=1, limit=4
  $region2: #{stanosa_forward.1} parent=0 // loop_pre_header
    _
  $region3: #{stanosa_forward.1} parent=0 // loop_header
    %s13 = sphi 0, %s17
    %p14 = scmp.ge.s32.totalorder %s13, 4
    %s23 = sphi 0, %s25
    %s26 = sphi 0, %s23
    %s27 = sphi 0, %s26
    %s43 = sphi 0, %s27
    %s47 = sphi 0, %s47
    %s49 = sphi 0, %s47
    %s50 = sphi 0, %s49
    %s64 = sphi 0, %s50
    %s68 = sphi 0, %s68
    %s70 = sphi 0, %s68
    %s71 = sphi 0, %s70
    %s85 = sphi 0, %s71
    %s89 = sphi 0, %s89
    %s91 = sphi 0, %s89
    %s92 = sphi 0, %s91
    %s106 = sphi 0, %s92
    %s110 = sphi 0, %s110
    %s112 = sphi 0, %s110
    %s113 = sphi 0, %s112
    %s127 = sphi 0, %s113
    %s133 = sphi 0, %s135
    %s136 = sphi 0, %s133
    %s137 = sphi 0, %s136
    %s153 = sphi 0, %s137
    %s159 = sphi 0, %s161
    %s162 = sphi 0, %s159
    %s163 = sphi 0, %s162
    %s179 = sphi 0, %s163
  $region4: #{stanosa_forward.1} parent=0 // loop_header_branch
    %16 = sbr.rel (%p14) target = $region8
  $region5: #{stanosa_forward.1} parent=0 // loop_body
    %s18 = ssub.s32 %s13, 1
    %s19 = ssub.s32 %s13, 2
    %s20 = sadd.s32 %s13, 1
    %s21 = ssub.s32 %s13, %s20
    %p22 = scmp.eq.s32.totalorder %s21, 0
    %s24 = sadd.s32 %s23, 1
    %s25 = scalar_select %p22, %s23, %s24
    %p28 = pneg %p22
    %p29 = scmp.eq.s32.totalorder %s13, 1
    %p30 = por %p28, %p29
    %p31 = scmp.ne.s32.totalorder %s23, %s26
    %p32 = scmp.eq.s32.totalorder %s13, 0
    %p33 = por %p31, %p32
    %p34 = scmp.ne.s32.totalorder %s23, %s26
    %p35 = scmp.eq.s32.totalorder %s18, 1
    %p36 = por %p34, %p35
    %p37 = scmp.ne.s32.totalorder %s26, %s27
    %p38 = scmp.eq.s32.totalorder %s18, 0
    %p39 = por %p37, %p38
    %p40 = scmp.ne.s32.totalorder %s26, %s27
    %p41 = scmp.eq.s32.totalorder %s19, 1
    %p42 = por %p40, %p41
    %p44 = scmp.ne.s32.totalorder %s27, %s43
    %p45 = scmp.eq.s32.totalorder %s19, 0
    %p46 = por %p44, %p45
    %s48 = sadd.s32 %s47, 1
    %p51 = scmp.eq.s32.totalorder %s13, 1
    %p52 = scmp.ne.s32.totalorder %s47, %s49
    %p53 = scmp.eq.s32.totalorder %s13, 0
    %p54 = por %p52, %p53
    %p55 = scmp.ne.s32.totalorder %s47, %s49
    %p56 = scmp.eq.s32.totalorder %s18, 1
    %p57 = por %p55, %p56
    %p58 = scmp.ne.s32.totalorder %s49, %s50
    %p59 = scmp.eq.s32.totalorder %s18, 0
    %p60 = por %p58, %p59
    %p61 = scmp.ne.s32.totalorder %s49, %s50
    %p62 = scmp.eq.s32.totalorder %s19, 1
    %p63 = por %p61, %p62
    %p65 = scmp.ne.s32.totalorder %s50, %s64
    %p66 = scmp.eq.s32.totalorder %s19, 0
    %p67 = por %p65, %p66
    %s69 = sadd.s32 %s68, 1
    %p72 = scmp.eq.s32.totalorder %s13, 1
    %p73 = scmp.ne.s32.totalorder %s68, %s70
    %p74 = scmp.eq.s32.totalorder %s13, 0
    %p75 = por %p73, %p74
    %p76 = scmp.ne.s32.totalorder %s68, %s70
    %p77 = scmp.eq.s32.totalorder %s18, 1
    %p78 = por %p76, %p77
    %p79 = scmp.ne.s32.totalorder %s70, %s71
    %p80 = scmp.eq.s32.totalorder %s18, 0
    %p81 = por %p79, %p80
    %p82 = scmp.ne.s32.totalorder %s70, %s71
    %p83 = scmp.eq.s32.totalorder %s19, 1
    %p84 = por %p82, %p83
    %p86 = scmp.ne.s32.totalorder %s71, %s85
    %p87 = scmp.eq.s32.totalorder %s19, 0
    %p88 = por %p86, %p87
    %s90 = sadd.s32 %s89, 1
    %p93 = scmp.eq.s32.totalorder %s13, 1
    %p94 = scmp.ne.s32.totalorder %s89, %s91
    %p95 = scmp.eq.s32.totalorder %s13, 0
    %p96 = por %p94, %p95
    %p97 = scmp.ne.s32.totalorder %s89, %s91
    %p98 = scmp.eq.s32.totalorder %s18, 1
    %p99 = por %p97, %p98
    %p100 = scmp.ne.s32.totalorder %s91, %s92
    %p101 = scmp.eq.s32.totalorder %s18, 0
    %p102 = por %p100, %p101
    %p103 = scmp.ne.s32.totalorder %s91, %s92
    %p104 = scmp.eq.s32.totalorder %s19, 1
    %p105 = por %p103, %p104
    %p107 = scmp.ne.s32.totalorder %s92, %s106
    %p108 = scmp.eq.s32.totalorder %s19, 0
    %p109 = por %p107, %p108
    %s111 = sadd.s32 %s110, 1
    %p114 = scmp.eq.s32.totalorder %s13, 1
    %p115 = scmp.ne.s32.totalorder %s110, %s112
    %p116 = scmp.eq.s32.totalorder %s13, 0
    %p117 = por %p115, %p116
    %p118 = scmp.ne.s32.totalorder %s110, %s112
    %p119 = scmp.eq.s32.totalorder %s18, 1
    %p120 = por %p118, %p119
    %p121 = scmp.ne.s32.totalorder %s112, %s113
    %p122 = scmp.eq.s32.totalorder %s18, 0
    %p123 = por %p121, %p122
    %p124 = scmp.ne.s32.totalorder %s112, %s113
    %p125 = scmp.eq.s32.totalorder %s19, 1
    %p126 = por %p124, %p125
    %p128 = scmp.ne.s32.totalorder %s113, %s127
    %p129 = scmp.eq.s32.totalorder %s19, 0
    %p130 = por %p128, %p129
    %s131 = ssub.s32 %s13, %s20
    %p132 = scmp.eq.s32.totalorder %s131, 0
    %s134 = sadd.s32 %s133, 1
    %s135 = scalar_select %p132, %s133, %s134
    %p138 = pneg %p132
    %p139 = scmp.eq.s32.totalorder %s13, 1
    %p140 = por %p138, %p139
    %p141 = scmp.ne.s32.totalorder %s133, %s136
    %p142 = scmp.eq.s32.totalorder %s13, 0
    %p143 = por %p141, %p142
    %p144 = scmp.ne.s32.totalorder %s133, %s136
    %p145 = scmp.eq.s32.totalorder %s18, 1
    %p146 = por %p144, %p145
    %p147 = scmp.ne.s32.totalorder %s136, %s137
    %p148 = scmp.eq.s32.totalorder %s18, 0
    %p149 = por %p147, %p148
    %p150 = scmp.ne.s32.totalorder %s136, %s137
    %p151 = scmp.eq.s32.totalorder %s19, 1
    %p152 = por %p150, %p151
    %p154 = scmp.ne.s32.totalorder %s137, %s153
    %p155 = scmp.eq.s32.totalorder %s19, 0
    %p156 = por %p154, %p155
    %s157 = ssub.s32 %s13, %s20
    %p158 = scmp.eq.s32.totalorder %s157, 0
    %s160 = sadd.s32 %s159, 1
    %s161 = scalar_select %p158, %s159, %s160
    %p164 = pneg %p158
    %p165 = scmp.eq.s32.totalorder %s13, 1
    %p166 = por %p164, %p165
    %p167 = scmp.ne.s32.totalorder %s159, %s162
    %p168 = scmp.eq.s32.totalorder %s13, 0
    %p169 = por %p167, %p168
    %p170 = scmp.ne.s32.totalorder %s159, %s162
    %p171 = scmp.eq.s32.totalorder %s18, 1
    %p172 = por %p170, %p171
    %p173 = scmp.ne.s32.totalorder %s162, %s163
    %p174 = scmp.eq.s32.totalorder %s18, 0
    %p175 = por %p173, %p174
    %p176 = scmp.ne.s32.totalorder %s162, %s163
    %p177 = scmp.eq.s32.totalorder %s19, 1
    %p178 = por %p176, %p177
    %p180 = scmp.ne.s32.totalorder %s163, %s179
    %p181 = scmp.eq.s32.totalorder %s19, 0
    %p182 = por %p180, %p181
    %p183 = scmp.le.s32.totalorder 1, %s13
    %p184 = scmp.lt.s32.totalorder %s13, 3
    %p185 = pnand %p183, %p184
    %p186 = pneg %p185
    // Predicated region
    $region9: #{stanosa_forward.1} parent=5 // pred_check
      _
    $region10: #{stanosa_forward.1} parent=5 // pred_check_branch
      %188 = sbr.rel (%p185) target = $region12
    $region11: #{stanosa_forward.1} parent=5 // pred_region
      %s189 = ssub.s32 %s13, 1
      // Predicated region
      $region13: #{stanosa_forward.1} parent=11 // pred_check
        %p190 = pneg %p60
      $region14: #{stanosa_forward.1} parent=11 // pred_check_branch
        %192 = sbr.rel (%p190) target = $region16
      $region15: #{stanosa_forward.1} parent=11 // pred_region
        _
      $region16: #{stanosa_forward.1} parent=11 // pred_fallthru
        _
      // Predicated region
      $region17: #{stanosa_forward.1} parent=11 // pred_check
        %p193 = pneg %p81
      $region18: #{stanosa_forward.1} parent=11 // pred_check_branch
        %195 = sbr.rel (%p193) target = $region20
      $region19: #{stanosa_forward.1} parent=11 // pred_region
        _
      $region20: #{stanosa_forward.1} parent=11 // pred_fallthru
        _
      // Predicated region
      $region21: #{stanosa_forward.1} parent=11 // pred_check
        %p196 = pneg %p102
      $region22: #{stanosa_forward.1} parent=11 // pred_check_branch
        %198 = sbr.rel (%p196) target = $region24
      $region23: #{stanosa_forward.1} parent=11 // pred_region
        _
      $region24: #{stanosa_forward.1} parent=11 // pred_fallthru
        _
      // Predicated region
      $region25: #{stanosa_forward.1} parent=11 // pred_check
        %p199 = pneg %p123
      $region26: #{stanosa_forward.1} parent=11 // pred_check_branch
        %201 = sbr.rel (%p199) target = $region28
      $region27: #{stanosa_forward.1} parent=11 // pred_region
        _
      $region28: #{stanosa_forward.1} parent=11 // pred_fallthru
        _
    $region12: #{stanosa_forward.1} parent=5 // pred_fallthru
      _
    %p202 = scmp.lt.s32.totalorder %s13, 2
    // Predicated region
    $region29: #{stanosa_forward.1} parent=5 // pred_check
      %p203 = pneg %p202
    $region30: #{stanosa_forward.1} parent=5 // pred_check_branch
      %205 = sbr.rel (%p203) target = $region32
    $region31: #{stanosa_forward.1} parent=5 // pred_region
      // Predicated region
      $region33: #{stanosa_forward.1} parent=31 // pred_check
        %p206 = pneg %p33
      $region34: #{stanosa_forward.1} parent=31 // pred_check_branch
        %208 = sbr.rel (%p206) target = $region36
      $region35: #{stanosa_forward.1} parent=31 // pred_region
        %s209 = smul.u32 32, %s13
        %p210 = scmp.lt.s32.totalorder %s209, 63
        %s211 = scalar_select %p210, %s209, 63
        %s212 = smul.addr %s211, 4
        %s213 = scalar_lea.vmem %s0, %s212
        %s214 = smul.u32 32, %s13
      $region36: #{stanosa_forward.1} parent=31 // pred_fallthru
        _
    $region32: #{stanosa_forward.1} parent=5 // pred_fallthru
      _
    %p215 = scmp.le.s32.totalorder 1, %s13
    %p216 = scmp.lt.s32.totalorder %s13, 3
    %p217 = pnand %p215, %p216
    %p218 = pneg %p217
    // Predicated region
    $region37: #{stanosa_forward.1} parent=5 // pred_check
      _
    $region38: #{stanosa_forward.1} parent=5 // pred_check_branch
      %220 = sbr.rel (%p217) target = $region40
    $region39: #{stanosa_forward.1} parent=5 // pred_region
      %s221 = ssub.s32 %s13, 1
      %s222 = smul.u32 32, %s18
      %p223 = scmp.lt.s32.totalorder %s222, 63
      %s224 = scalar_select %p223, %s222, 63
      %s225 = smul.addr %s224, 4
      %s226 = scalar_lea.vmem %s0, %s225
      %p227 = pneg %p39
      %p228 = pneg %p36
      %p229 = pneg %p60
      %p230 = pneg %p57
      %p231 = pneg %p81
      %p232 = pneg %p78
      %p233 = pneg %p102
      %p234 = pneg %p99
      %p235 = pneg %p123
      %p236 = pneg %p120
      %p237 = pneg %p149
      %p238 = pneg %p146
      %s239 = smul.u32 32, %s18
      %p240 = scmp.lt.s32.totalorder %s239, 63
      %s241 = scalar_select %p240, %s239, 63
      %s242 = smul.addr %s241, 8
      %s243 = scalar_lea.vmem %s5, %s242
      %p244 = pneg %p175
      %p245 = pneg %p172
      %s246 = smul.u32 32, %s18
      %p247 = scmp.lt.s32.totalorder %s246, 63
      %s248 = scalar_select %p247, %s246, 63
      %s249 = smul.addr %s248, 8
      %s250 = scalar_lea.vmem %s6, %s249
      %s251 = smul.u32 32, %s18
      %p252 = scmp.lt.s32.totalorder %s251, 63
      %s253 = scalar_select %p252, %s251, 63
      %s254 = smul.addr %s253, 4
      %s255 = scalar_lea.vmem %s0, %s254
      %s256 = smul.u32 32, %s18
      %s257 = smul.u32 32, %s18
      %p258 = scmp.lt.s32.totalorder %s257, 63
      %s259 = scalar_select %p258, %s257, 63
      %s260 = smul.addr %s259, 8
      %s261 = scalar_lea.vmem %s5, %s260
      %s262 = smul.u32 32, %s18
      %s263 = smul.u32 32, %s18
      %p264 = scmp.lt.s32.totalorder %s263, 63
      %s265 = scalar_select %p264, %s263, 63
      %s266 = smul.addr %s265, 8
      %s267 = scalar_lea.vmem %s6, %s266
      %s268 = smul.u32 32, %s18
      %v270 = vld [vmem:[%s255] sm:$0xf]
      %v271 = vld [vmem:[%s255 + $0x4] sm:$0xf]
      %v272 = vld [vmem:[%s255 + $0x8] sm:$0xf]
      %v273 = vld [vmem:[%s255 + $0xc] sm:$0xf]
      %v274 = vld [vmem:[%s255 + $0x10] sm:$0xf]
      %v275 = vld [vmem:[%s255 + $0x14] sm:$0xf]
      %v276 = vld [vmem:[%s255 + $0x18] sm:$0xf]
      %v277 = vld [vmem:[%s255 + $0x1c] sm:$0xf]
      %v278 = vld [vmem:[%s255 + $0x20] sm:$0xf]
      %v279 = vld [vmem:[%s255 + $0x24] sm:$0xf]
      %v280 = vld [vmem:[%s255 + $0x28] sm:$0xf]
      %v281 = vld [vmem:[%s255 + $0x2c] sm:$0xf]
      %v282 = vld [vmem:[%s255 + $0x30] sm:$0xf]
      %v283 = vld [vmem:[%s255 + $0x34] sm:$0xf]
      %v284 = vld [vmem:[%s255 + $0x38] sm:$0xf]
      %v285 = vld [vmem:[%s255 + $0x3c] sm:$0xf]
      %v286 = vld [vmem:[%s255 + $0x40] sm:$0xf]
      %v287 = vld [vmem:[%s255 + $0x44] sm:$0xf]
      %v288 = vld [vmem:[%s255 + $0x48] sm:$0xf]
      %v289 = vld [vmem:[%s255 + $0x4c] sm:$0xf]
      %v290 = vld [vmem:[%s255 + $0x50] sm:$0xf]
      %v291 = vld [vmem:[%s255 + $0x54] sm:$0xf]
      %v292 = vld [vmem:[%s255 + $0x58] sm:$0xf]
      %v293 = vld [vmem:[%s255 + $0x5c] sm:$0xf]
      %v294 = vld [vmem:[%s255 + $0x60] sm:$0xf]
      %v295 = vld [vmem:[%s255 + $0x64] sm:$0xf]
      %v296 = vld [vmem:[%s255 + $0x68] sm:$0xf]
      %v297 = vld [vmem:[%s255 + $0x6c] sm:$0xf]
      %v298 = vld [vmem:[%s255 + $0x70] sm:$0xf]
      %v299 = vld [vmem:[%s255 + $0x74] sm:$0xf]
      %v300 = vld [vmem:[%s255 + $0x78] sm:$0xf]
      %v301 = vld [vmem:[%s255 + $0x7c] sm:$0xf]
      %v302 = vld [vmem:[%s1] sm:$0xf]
      %v303 = vld [vmem:[%s1 + $0x4] sm:$0xf]
      %v304 = vld [vmem:[%s1 + $0x8] sm:$0xf]
      %v305 = vld [vmem:[%s1 + $0xc] sm:$0xf]
      %v306 = vld [vmem:[%s1 + $0x10] sm:$0xf]
      %v307 = vld [vmem:[%s1 + $0x14] sm:$0xf]
      %v308 = vld [vmem:[%s1 + $0x18] sm:$0xf]
      %v309 = vld [vmem:[%s1 + $0x1c] sm:$0xf]
      %v310 = vld [vmem:[%s1 + $0x20] sm:$0xf]
      %v311 = vld [vmem:[%s1 + $0x24] sm:$0xf]
      %v312 = vld [vmem:[%s1 + $0x28] sm:$0xf]
      %v313 = vld [vmem:[%s1 + $0x2c] sm:$0xf]
      %v314 = vld [vmem:[%s1 + $0x30] sm:$0xf]
      %v315 = vld [vmem:[%s1 + $0x34] sm:$0xf]
      %v316 = vld [vmem:[%s1 + $0x38] sm:$0xf]
      %v317 = vld [vmem:[%s1 + $0x3c] sm:$0xf]
      %v318 = vld [vmem:[%s2] sm:$0x1]
      %v320 = vlaneseq
      %v321 = vshrl.u32 %v320, 7
      %v322 = vsub.s32 0, %v321
      %v323 = vrot.slane %v318, %v322
      %v357 = vunpack.c.l.b16 %v270
      %v358 = vunpack.c.l.b16 %v271
      %v359 = vunpack.c.l.b16 %v272
      %v360 = vunpack.c.l.b16 %v273
      %v361 = vunpack.c.l.b16 %v274
      %v362 = vunpack.c.l.b16 %v275
      %v363 = vunpack.c.l.b16 %v276
      %v364 = vunpack.c.l.b16 %v277
      %v365 = vunpack.c.l.b16 %v278
      %v366 = vunpack.c.l.b16 %v279
      %v367 = vunpack.c.l.b16 %v280
      %v368 = vunpack.c.l.b16 %v281
      %v369 = vunpack.c.l.b16 %v282
      %v370 = vunpack.c.l.b16 %v283
      %v371 = vunpack.c.l.b16 %v284
      %v372 = vunpack.c.l.b16 %v285
      %v373 = vunpack.c.l.b16 %v286
      %v374 = vunpack.c.l.b16 %v287
      %v375 = vunpack.c.l.b16 %v288
      %v376 = vunpack.c.l.b16 %v289
      %v377 = vunpack.c.l.b16 %v290
      %v378 = vunpack.c.l.b16 %v291
      %v379 = vunpack.c.l.b16 %v292
      %v380 = vunpack.c.l.b16 %v293
      %v381 = vunpack.c.l.b16 %v294
      %v382 = vunpack.c.l.b16 %v295
      %v383 = vunpack.c.l.b16 %v296
      %v384 = vunpack.c.l.b16 %v297
      %v385 = vunpack.c.l.b16 %v298
      %v386 = vunpack.c.l.b16 %v299
      %v387 = vunpack.c.l.b16 %v300
      %v388 = vunpack.c.l.b16 %v301
      %v389 = vpack.c.b16 %v358, %v357
      %v390 = vpack.c.b16 %v360, %v359
      %v391 = vpack.c.b16 %v362, %v361
      %v392 = vpack.c.b16 %v364, %v363
      %v393 = vpack.c.b16 %v366, %v365
      %v394 = vpack.c.b16 %v368, %v367
      %v395 = vpack.c.b16 %v370, %v369
      %v396 = vpack.c.b16 %v372, %v371
      %v397 = vpack.c.b16 %v374, %v373
      %v398 = vpack.c.b16 %v376, %v375
      %v399 = vpack.c.b16 %v378, %v377
      %v400 = vpack.c.b16 %v380, %v379
      %v401 = vpack.c.b16 %v382, %v381
      %v402 = vpack.c.b16 %v384, %v383
      %v403 = vpack.c.b16 %v386, %v385
      %v404 = vpack.c.b16 %v388, %v387
      %v437 = vunpack.c.l.b16 %v302
      %v438 = vunpack.c.l.b16 %v303
      %v439 = vunpack.c.l.b16 %v304
      %v440 = vunpack.c.l.b16 %v305
      %v441 = vunpack.c.l.b16 %v306
      %v442 = vunpack.c.l.b16 %v307
      %v443 = vunpack.c.l.b16 %v308
      %v444 = vunpack.c.l.b16 %v309
      %v445 = vunpack.c.l.b16 %v310
      %v446 = vunpack.c.l.b16 %v311
      %v447 = vunpack.c.l.b16 %v312
      %v448 = vunpack.c.l.b16 %v313
      %v449 = vunpack.c.l.b16 %v314
      %v450 = vunpack.c.l.b16 %v315
      %v451 = vunpack.c.l.b16 %v316
      %v452 = vunpack.c.l.b16 %v317
      %v453 = vpack.c.b16 %v438, %v437
      %v454 = vpack.c.b16 %v440, %v439
      %v455 = vpack.c.b16 %v442, %v441
      %v456 = vpack.c.b16 %v444, %v443
      %v457 = vpack.c.b16 %v446, %v445
      %v458 = vpack.c.b16 %v448, %v447
      %v459 = vpack.c.b16 %v450, %v449
      %v460 = vpack.c.b16 %v452, %v451
      %469 = vmatprep.subr.bf16.mxu0 0
      %470 = vmatpush1.bf16.msra.mxu0 %v453
      %471 = vmatprep.subr.bf16.mxu0 0
      %472 = vmatpush1.bf16.msra.mxu0 %v454
      %473 = vmatprep.subr.bf16.mxu0 0
      %474 = vmatpush1.bf16.msra.mxu0 %v455
      %475 = vmatprep.subr.bf16.mxu0 0
      %476 = vmatpush1.bf16.msra.mxu0 %v456
      %477 = vmatprep.subr.bf16.mxu0 0
      %478 = vmatpush1.bf16.msra.mxu0 %v457
      %479 = vmatprep.subr.bf16.mxu0 0
      %480 = vmatpush1.bf16.msra.mxu0 %v458
      %481 = vmatprep.subr.bf16.mxu0 0
      %482 = vmatpush1.bf16.msra.mxu0 %v459
      %483 = vmatprep.subr.bf16.mxu0 0
      %484 = vmatpush1.bf16.msra.mxu0 %v460
      %485 = vmatprep.subr.bf16.mxu0 0
      %486 = vmatpush1.bf16.msra.mxu0 0
      %487 = vmatprep.subr.bf16.mxu0 0
      %488 = vmatpush1.bf16.msra.mxu0 0
      %489 = vmatprep.subr.bf16.mxu0 0
      %490 = vmatpush1.bf16.msra.mxu0 0
      %491 = vmatprep.subr.bf16.mxu0 0
      %492 = vmatpush1.bf16.msra.mxu0 0
      %493 = vmatprep.subr.bf16.mxu0 0
      %494 = vmatpush1.bf16.msra.mxu0 0
      %495 = vmatprep.subr.bf16.mxu0 0
      %496 = vmatpush1.bf16.msra.mxu0 0
      %497 = vmatprep.subr.bf16.mxu0 0
      %498 = vmatpush1.bf16.msra.mxu0 0
      %499 = vmatprep.subr.bf16.mxu0 0
      %500 = vmatpush1.bf16.msra.mxu0 0
      %501 = vmatprep.mubr.bf16.mxu0 0
      %502 = vmatmul.mubr.bf16.gmra.mrb[0].mxu0 %v389
      %v503 = vpop.f32.mrb[0].mxu0
      %v504 = vadd.f32 %v323, %v503
      %v505 = vpop.f32.mrb[0].mxu0
      %v506 = vpop.f32.mrb[0].mxu0
      %v507 = vadd.f32 %v323, %v506
      %v508 = vpop.f32.mrb[0].mxu0
      %509 = vmatprep.mubr.bf16.mxu0 0
      %510 = vmatmul.mubr.bf16.gmra.mrb[0].mxu0 %v390
      %v511 = vpop.f32.mrb[0].mxu0
      %v512 = vadd.f32 %v323, %v511
      %v513 = vpop.f32.mrb[0].mxu0
      %v514 = vpop.f32.mrb[0].mxu0
      %v515 = vadd.f32 %v323, %v514
      %v516 = vpop.f32.mrb[0].mxu0
      %517 = vmatprep.mubr.bf16.mxu0 0
      %518 = vmatmul.mubr.bf16.gmra.mrb[0].mxu0 %v391
      %v519 = vpop.f32.mrb[0].mxu0
      %v520 = vadd.f32 %v323, %v519
      %v521 = vpop.f32.mrb[0].mxu0
      %v522 = vpop.f32.mrb[0].mxu0
      %v523 = vadd.f32 %v323, %v522
      %v524 = vpop.f32.mrb[0].mxu0
      %525 = vmatprep.mubr.bf16.mxu0 0
      %526 = vmatmul.mubr.bf16.gmra.mrb[0].mxu0 %v392
      %v527 = vpop.f32.mrb[0].mxu0
      %v528 = vadd.f32 %v323, %v527
      %v529 = vpop.f32.mrb[0].mxu0
      %v530 = vpop.f32.mrb[0].mxu0
      %v531 = vadd.f32 %v323, %v530
      %v532 = vpop.f32.mrb[0].mxu0
      %533 = vmatprep.mubr.bf16.mxu0 0
      %534 = vmatmul.mubr.bf16.gmra.mrb[0].mxu0 %v393
      %v535 = vpop.f32.mrb[0].mxu0
      %v536 = vadd.f32 %v323, %v535
      %v537 = vpop.f32.mrb[0].mxu0
      %v538 = vpop.f32.mrb[0].mxu0
      %v539 = vadd.f32 %v323, %v538
      %v540 = vpop.f32.mrb[0].mxu0
      %541 = vmatprep.mubr.bf16.mxu0 0
      %542 = vmatmul.mubr.bf16.gmra.mrb[0].mxu0 %v394
      %v543 = vpop.f32.mrb[0].mxu0
      %v544 = vadd.f32 %v323, %v543
      %v545 = vpop.f32.mrb[0].mxu0
      %v546 = vpop.f32.mrb[0].mxu0
      %v547 = vadd.f32 %v323, %v546
      %v548 = vpop.f32.mrb[0].mxu0
      %549 = vmatprep.mubr.bf16.mxu0 0
      %550 = vmatmul.mubr.bf16.gmra.mrb[0].mxu0 %v395
      %v551 = vpop.f32.mrb[0].mxu0
      %v552 = vadd.f32 %v323, %v551
      %v553 = vpop.f32.mrb[0].mxu0
      %v554 = vpop.f32.mrb[0].mxu0
      %v555 = vadd.f32 %v323, %v554
      %v556 = vpop.f32.mrb[0].mxu0
      %557 = vmatprep.mubr.bf16.mxu0 0
      %558 = vmatmul.mubr.bf16.gmra.mrb[0].mxu0 %v396
      %v559 = vpop.f32.mrb[0].mxu0
      %v560 = vadd.f32 %v323, %v559
      %v561 = vpop.f32.mrb[0].mxu0
      %v562 = vpop.f32.mrb[0].mxu0
      %v563 = vadd.f32 %v323, %v562
      %v564 = vpop.f32.mrb[0].mxu0
      %565 = vmatprep.mubr.bf16.mxu0 0
      %566 = vmatmul.mubr.bf16.gmra.mrb[0].mxu0 %v397
      %v567 = vpop.f32.mrb[0].mxu0
      %v568 = vadd.f32 %v323, %v567
      %v569 = vpop.f32.mrb[0].mxu0
      %v570 = vpop.f32.mrb[0].mxu0
      %v571 = vadd.f32 %v323, %v570
      %v572 = vpop.f32.mrb[0].mxu0
      %573 = vmatprep.mubr.bf16.mxu0 0
      %574 = vmatmul.mubr.bf16.gmra.mrb[0].mxu0 %v398
      %v575 = vpop.f32.mrb[0].mxu0
      %v576 = vadd.f32 %v323, %v575
      %v577 = vpop.f32.mrb[0].mxu0
      %v578 = vpop.f32.mrb[0].mxu0
      %v579 = vadd.f32 %v323, %v578
      %v580 = vpop.f32.mrb[0].mxu0
      %581 = vmatprep.mubr.bf16.mxu0 0
      %582 = vmatmul.mubr.bf16.gmra.mrb[0].mxu0 %v399
      %v583 = vpop.f32.mrb[0].mxu0
      %v584 = vadd.f32 %v323, %v583
      %v585 = vpop.f32.mrb[0].mxu0
      %v586 = vpop.f32.mrb[0].mxu0
      %v587 = vadd.f32 %v323, %v586
      %v588 = vpop.f32.mrb[0].mxu0
      %589 = vmatprep.mubr.bf16.mxu0 0
      %590 = vmatmul.mubr.bf16.gmra.mrb[0].mxu0 %v400
      %v591 = vpop.f32.mrb[0].mxu0
      %v592 = vadd.f32 %v323, %v591
      %v593 = vpop.f32.mrb[0].mxu0
      %v594 = vpop.f32.mrb[0].mxu0
      %v595 = vadd.f32 %v323, %v594
      %v596 = vpop.f32.mrb[0].mxu0
      %597 = vmatprep.mubr.bf16.mxu0 0
      %598 = vmatmul.mubr.bf16.gmra.mrb[0].mxu0 %v401
      %v599 = vpop.f32.mrb[0].mxu0
      %v600 = vadd.f32 %v323, %v599
      %v601 = vpop.f32.mrb[0].mxu0
      %v602 = vpop.f32.mrb[0].mxu0
      %v603 = vadd.f32 %v323, %v602
      %v604 = vpop.f32.mrb[0].mxu0
      %605 = vmatprep.mubr.bf16.mxu0 0
      %606 = vmatmul.mubr.bf16.gmra.mrb[0].mxu0 %v402
      %v607 = vpop.f32.mrb[0].mxu0
      %v608 = vadd.f32 %v323, %v607
      %v609 = vpop.f32.mrb[0].mxu0
      %v610 = vpop.f32.mrb[0].mxu0
      %v611 = vadd.f32 %v323, %v610
      %v612 = vpop.f32.mrb[0].mxu0
      %613 = vmatprep.mubr.bf16.mxu0 0
      %614 = vmatmul.mubr.bf16.gmra.mrb[0].mxu0 %v403
      %v615 = vpop.f32.mrb[0].mxu0
      %v616 = vadd.f32 %v323, %v615
      %v617 = vpop.f32.mrb[0].mxu0
      %v618 = vpop.f32.mrb[0].mxu0
      %v619 = vadd.f32 %v323, %v618
      %v620 = vpop.f32.mrb[0].mxu0
      %621 = vmatprep.mubr.bf16.mxu0 0
      %622 = vmatmul.mubr.bf16.gmra.mrb[0].mxu0 %v404
      %v623 = vpop.f32.mrb[0].mxu0
      %v624 = vadd.f32 %v323, %v623
      %v625 = vpop.f32.mrb[0].mxu0
      %v626 = vpop.f32.mrb[0].mxu0
      %v627 = vadd.f32 %v323, %v626
      %v628 = vpop.f32.mrb[0].mxu0
      %629 = vdwg.mxu0
      %v630 = vtanh.pop %v504
      %v631 = vtanh.pop %v507
      %v632 = vtanh.pop %v512
      %v633 = vtanh.pop %v515
      %v634 = vtanh.pop %v520
      %v635 = vtanh.pop %v523
      %v636 = vtanh.pop %v528
      %v637 = vtanh.pop %v531
      %v638 = vtanh.pop %v536
      %v639 = vtanh.pop %v539
      %v640 = vtanh.pop %v544
      %v641 = vtanh.pop %v547
      %v642 = vtanh.pop %v552
      %v643 = vtanh.pop %v555
      %v644 = vtanh.pop %v560
      %v645 = vtanh.pop %v563
      %v646 = vtanh.pop %v568
      %v647 = vtanh.pop %v571
      %v648 = vtanh.pop %v576
      %v649 = vtanh.pop %v579
      %v650 = vtanh.pop %v584
      %v651 = vtanh.pop %v587
      %v652 = vtanh.pop %v592
      %v653 = vtanh.pop %v595
      %v654 = vtanh.pop %v600
      %v655 = vtanh.pop %v603
      %v656 = vtanh.pop %v608
      %v657 = vtanh.pop %v611
      %v658 = vtanh.pop %v616
      %v659 = vtanh.pop %v619
      %v660 = vtanh.pop %v624
      %v661 = vtanh.pop %v627
      %v662 = vpack.c.bf16 %v631, %v630
      %v663 = vpack.c.bf16 %v633, %v632
      %v664 = vpack.c.bf16 %v635, %v634
      %v665 = vpack.c.bf16 %v637, %v636
      %v666 = vpack.c.bf16 %v639, %v638
      %v667 = vpack.c.bf16 %v641, %v640
      %v668 = vpack.c.bf16 %v643, %v642
      %v669 = vpack.c.bf16 %v645, %v644
      %v670 = vpack.c.bf16 %v647, %v646
      %v671 = vpack.c.bf16 %v649, %v648
      %v672 = vpack.c.bf16 %v651, %v650
      %v673 = vpack.c.bf16 %v653, %v652
      %v674 = vpack.c.bf16 %v655, %v654
      %v675 = vpack.c.bf16 %v657, %v656
      %v676 = vpack.c.bf16 %v659, %v658
      %v677 = vpack.c.bf16 %v661, %v660
      %v678 = vld [vmem:[%s3] sm:$0xf]
      %v679 = vld [vmem:[%s3 + $0x4] sm:$0xf]
      %v680 = vld [vmem:[%s3 + $0x8] sm:$0xf]
      %v681 = vld [vmem:[%s3 + $0xc] sm:$0xf]
      %v682 = vld [vmem:[%s3 + $0x10] sm:$0xf]
      %v683 = vld [vmem:[%s3 + $0x14] sm:$0xf]
      %v684 = vld [vmem:[%s3 + $0x18] sm:$0xf]
      %v685 = vld [vmem:[%s3 + $0x1c] sm:$0xf]
      %v686 = vld [vmem:[%s3 + $0x20] sm:$0xf]
      %v687 = vld [vmem:[%s3 + $0x24] sm:$0xf]
      %v688 = vld [vmem:[%s3 + $0x28] sm:$0xf]
      %v689 = vld [vmem:[%s3 + $0x2c] sm:$0xf]
      %v690 = vld [vmem:[%s3 + $0x30] sm:$0xf]
      %v691 = vld [vmem:[%s3 + $0x34] sm:$0xf]
      %v692 = vld [vmem:[%s3 + $0x38] sm:$0xf]
      %v693 = vld [vmem:[%s3 + $0x3c] sm:$0xf]
      %v694 = vld [vmem:[%s4] sm:$0x1]
      %v696 = vlaneseq
      %v697 = vshrl.u32 %v696, 7
      %v698 = vsub.s32 0, %v697
      %v699 = vrot.slane %v694, %v698
      %v717 = vunpack.c.l.b16 %v678
      %v718 = vunpack.c.l.b16 %v679
      %v719 = vunpack.c.l.b16 %v680
      %v720 = vunpack.c.l.b16 %v681
      %v721 = vunpack.c.l.b16 %v682
      %v722 = vunpack.c.l.b16 %v683
      %v723 = vunpack.c.l.b16 %v684
      %v724 = vunpack.c.l.b16 %v685
      %v725 = vunpack.c.l.b16 %v686
      %v726 = vunpack.c.l.b16 %v687
      %v727 = vunpack.c.l.b16 %v688
      %v728 = vunpack.c.l.b16 %v689
      %v729 = vunpack.c.l.b16 %v690
      %v730 = vunpack.c.l.b16 %v691
      %v731 = vunpack.c.l.b16 %v692
      %v732 = vunpack.c.l.b16 %v693
      %v733 = vpack.c.b16 %v718, %v717
      %v734 = vpack.c.b16 %v720, %v719
      %v735 = vpack.c.b16 %v722, %v721
      %v736 = vpack.c.b16 %v724, %v723
      %v737 = vpack.c.b16 %v726, %v725
      %v738 = vpack.c.b16 %v728, %v727
      %v739 = vpack.c.b16 %v730, %v729
      %v740 = vpack.c.b16 %v732, %v731
      %749 = vmatprep.subr.bf16.mxu0 0
      %750 = vmatpush1.bf16.msra.mxu0 %v733
      %751 = vmatprep.subr.bf16.mxu0 0
      %752 = vmatpush1.bf16.msra.mxu0 %v734
      %753 = vmatprep.subr.bf16.mxu0 0
      %754 = vmatpush1.bf16.msra.mxu0 %v735
      %755 = vmatprep.subr.bf16.mxu0 0
      %756 = vmatpush1.bf16.msra.mxu0 %v736
      %757 = vmatprep.subr.bf16.mxu0 0
      %758 = vmatpush1.bf16.msra.mxu0 %v737
      %759 = vmatprep.subr.bf16.mxu0 0
      %760 = vmatpush1.bf16.msra.mxu0 %v738
      %761 = vmatprep.subr.bf16.mxu0 0
      %762 = vmatpush1.bf16.msra.mxu0 %v739
      %763 = vmatprep.subr.bf16.mxu0 0
      %764 = vmatpush1.bf16.msra.mxu0 %v740
      %765 = vmatprep.subr.bf16.mxu0 0
      %766 = vmatpush1.bf16.msra.mxu0 0
      %767 = vmatprep.subr.bf16.mxu0 0
      %768 = vmatpush1.bf16.msra.mxu0 0
      %769 = vmatprep.subr.bf16.mxu0 0
      %770 = vmatpush1.bf16.msra.mxu0 0
      %771 = vmatprep.subr.bf16.mxu0 0
      %772 = vmatpush1.bf16.msra.mxu0 0
      %773 = vmatprep.subr.bf16.mxu0 0
      %774 = vmatpush1.bf16.msra.mxu0 0
      %775 = vmatprep.subr.bf16.mxu0 0
      %776 = vmatpush1.bf16.msra.mxu0 0
      %777 = vmatprep.subr.bf16.mxu0 0
      %778 = vmatpush1.bf16.msra.mxu0 0
      %779 = vmatprep.subr.bf16.mxu0 0
      %780 = vmatpush1.bf16.msra.mxu0 0
      %781 = vmatprep.mubr.bf16.mxu0 0
      %782 = vmatmul.mubr.bf16.gmra.mrb[0].mxu0 %v662
      %v783 = vpop.f32.mrb[0].mxu0
      %v784 = vadd.f32 %v699, %v783
      %v785 = vpop.f32.mrb[0].mxu0
      %v786 = vpop.f32.mrb[0].mxu0
      %v787 = vadd.f32 %v699, %v786
      %v788 = vpop.f32.mrb[0].mxu0
      %789 = vmatprep.mubr.bf16.mxu0 0
      %790 = vmatmul.mubr.bf16.gmra.mrb[0].mxu0 %v663
      %v791 = vpop.f32.mrb[0].mxu0
      %v792 = vadd.f32 %v699, %v791
      %v793 = vpop.f32.mrb[0].mxu0
      %v794 = vpop.f32.mrb[0].mxu0
      %v795 = vadd.f32 %v699, %v794
      %v796 = vpop.f32.mrb[0].mxu0
      %797 = vmatprep.mubr.bf16.mxu0 0
      %798 = vmatmul.mubr.bf16.gmra.mrb[0].mxu0 %v664
      %v799 = vpop.f32.mrb[0].mxu0
      %v800 = vadd.f32 %v699, %v799
      %v801 = vpop.f32.mrb[0].mxu0
      %v802 = vpop.f32.mrb[0].mxu0
      %v803 = vadd.f32 %v699, %v802
      %v804 = vpop.f32.mrb[0].mxu0
      %805 = vmatprep.mubr.bf16.mxu0 0
      %806 = vmatmul.mubr.bf16.gmra.mrb[0].mxu0 %v665
      %v807 = vpop.f32.mrb[0].mxu0
      %v808 = vadd.f32 %v699, %v807
      %v809 = vpop.f32.mrb[0].mxu0
      %v810 = vpop.f32.mrb[0].mxu0
      %v811 = vadd.f32 %v699, %v810
      %v812 = vpop.f32.mrb[0].mxu0
      %813 = vmatprep.mubr.bf16.mxu0 0
      %814 = vmatmul.mubr.bf16.gmra.mrb[0].mxu0 %v666
      %v815 = vpop.f32.mrb[0].mxu0
      %v816 = vadd.f32 %v699, %v815
      %v817 = vpop.f32.mrb[0].mxu0
      %v818 = vpop.f32.mrb[0].mxu0
      %v819 = vadd.f32 %v699, %v818
      %v820 = vpop.f32.mrb[0].mxu0
      %821 = vmatprep.mubr.bf16.mxu0 0
      %822 = vmatmul.mubr.bf16.gmra.mrb[0].mxu0 %v667
      %v823 = vpop.f32.mrb[0].mxu0
      %v824 = vadd.f32 %v699, %v823
      %v825 = vpop.f32.mrb[0].mxu0
      %v826 = vpop.f32.mrb[0].mxu0
      %v827 = vadd.f32 %v699, %v826
      %v828 = vpop.f32.mrb[0].mxu0
      %829 = vmatprep.mubr.bf16.mxu0 0
      %830 = vmatmul.mubr.bf16.gmra.mrb[0].mxu0 %v668
      %v831 = vpop.f32.mrb[0].mxu0
      %v832 = vadd.f32 %v699, %v831
      %v833 = vpop.f32.mrb[0].mxu0
      %v834 = vpop.f32.mrb[0].mxu0
      %v835 = vadd.f32 %v699, %v834
      %v836 = vpop.f32.mrb[0].mxu0
      %837 = vmatprep.mubr.bf16.mxu0 0
      %838 = vmatmul.mubr.bf16.gmra.mrb[0].mxu0 %v669
      %v839 = vpop.f32.mrb[0].mxu0
      %v840 = vadd.f32 %v699, %v839
      %v841 = vpop.f32.mrb[0].mxu0
      %v842 = vpop.f32.mrb[0].mxu0
      %v843 = vadd.f32 %v699, %v842
      %v844 = vpop.f32.mrb[0].mxu0
      %845 = vmatprep.mubr.bf16.mxu0 0
      %846 = vmatmul.mubr.bf16.gmra.mrb[0].mxu0 %v670
      %v847 = vpop.f32.mrb[0].mxu0
      %v848 = vadd.f32 %v699, %v847
      %v849 = vpop.f32.mrb[0].mxu0
      %v850 = vpop.f32.mrb[0].mxu0
      %v851 = vadd.f32 %v699, %v850
      %v852 = vpop.f32.mrb[0].mxu0
      %853 = vmatprep.mubr.bf16.mxu0 0
      %854 = vmatmul.mubr.bf16.gmra.mrb[0].mxu0 %v671
      %v855 = vpop.f32.mrb[0].mxu0
      %v856 = vadd.f32 %v699, %v855
      %v857 = vpop.f32.mrb[0].mxu0
      %v858 = vpop.f32.mrb[0].mxu0
      %v859 = vadd.f32 %v699, %v858
      %v860 = vpop.f32.mrb[0].mxu0
      %861 = vmatprep.mubr.bf16.mxu0 0
      %862 = vmatmul.mubr.bf16.gmra.mrb[0].mxu0 %v672
      %v863 = vpop.f32.mrb[0].mxu0
      %v864 = vadd.f32 %v699, %v863
      %v865 = vpop.f32.mrb[0].mxu0
      %v866 = vpop.f32.mrb[0].mxu0
      %v867 = vadd.f32 %v699, %v866
      %v868 = vpop.f32.mrb[0].mxu0
      %869 = vmatprep.mubr.bf16.mxu0 0
      %870 = vmatmul.mubr.bf16.gmra.mrb[0].mxu0 %v673
      %v871 = vpop.f32.mrb[0].mxu0
      %v872 = vadd.f32 %v699, %v871
      %v873 = vpop.f32.mrb[0].mxu0
      %v874 = vpop.f32.mrb[0].mxu0
      %v875 = vadd.f32 %v699, %v874
      %v876 = vpop.f32.mrb[0].mxu0
      %877 = vmatprep.mubr.bf16.mxu0 0
      %878 = vmatmul.mubr.bf16.gmra.mrb[0].mxu0 %v674
      %v879 = vpop.f32.mrb[0].mxu0
      %v880 = vadd.f32 %v699, %v879
      %v881 = vpop.f32.mrb[0].mxu0
      %v882 = vpop.f32.mrb[0].mxu0
      %v883 = vadd.f32 %v699, %v882
      %v884 = vpop.f32.mrb[0].mxu0
      %885 = vmatprep.mubr.bf16.mxu0 0
      %886 = vmatmul.mubr.bf16.gmra.mrb[0].mxu0 %v675
      %v887 = vpop.f32.mrb[0].mxu0
      %v888 = vadd.f32 %v699, %v887
      %v889 = vpop.f32.mrb[0].mxu0
      %v890 = vpop.f32.mrb[0].mxu0
      %v891 = vadd.f32 %v699, %v890
      %v892 = vpop.f32.mrb[0].mxu0
      %893 = vmatprep.mubr.bf16.mxu0 0
      %894 = vmatmul.mubr.bf16.gmra.mrb[0].mxu0 %v676
      %v895 = vpop.f32.mrb[0].mxu0
      %v896 = vadd.f32 %v699, %v895
      %v897 = vpop.f32.mrb[0].mxu0
      %v898 = vpop.f32.mrb[0].mxu0
      %v899 = vadd.f32 %v699, %v898
      %v900 = vpop.f32.mrb[0].mxu0
      %901 = vmatprep.mubr.bf16.mxu0 0
      %902 = vmatmul.mubr.bf16.gmra.mrb[0].mxu0 %v677
      %v903 = vpop.f32.mrb[0].mxu0
      %v904 = vadd.f32 %v699, %v903
      %v905 = vpop.f32.mrb[0].mxu0
      %v906 = vpop.f32.mrb[0].mxu0
      %v907 = vadd.f32 %v699, %v906
      %v908 = vpop.f32.mrb[0].mxu0
      %909 = vdwg.mxu0
      %910 = vst [vmem:[%s261] sm:$0xff] %v630
      %911 = vst [vmem:[%s261 + $0x8] sm:$0xff] %v631
      %912 = vst [vmem:[%s261 + $0x10] sm:$0xff] %v632
      %913 = vst [vmem:[%s261 + $0x18] sm:$0xff] %v633
      %914 = vst [vmem:[%s261 + $0x20] sm:$0xff] %v634
      %915 = vst [vmem:[%s261 + $0x28] sm:$0xff] %v635
      %916 = vst [vmem:[%s261 + $0x30] sm:$0xff] %v636
      %917 = vst [vmem:[%s261 + $0x38] sm:$0xff] %v637
      %918 = vst [vmem:[%s261 + $0x40] sm:$0xff] %v638
      %919 = vst [vmem:[%s261 + $0x48] sm:$0xff] %v639
      %920 = vst [vmem:[%s261 + $0x50] sm:$0xff] %v640
      %921 = vst [vmem:[%s261 + $0x58] sm:$0xff] %v641
      %922 = vst [vmem:[%s261 + $0x60] sm:$0xff] %v642
      %923 = vst [vmem:[%s261 + $0x68] sm:$0xff] %v643
      %924 = vst [vmem:[%s261 + $0x70] sm:$0xff] %v644
      %925 = vst [vmem:[%s261 + $0x78] sm:$0xff] %v645
      %926 = vst [vmem:[%s261 + $0x80] sm:$0xff] %v646
      %927 = vst [vmem:[%s261 + $0x88] sm:$0xff] %v647
      %928 = vst [vmem:[%s261 + $0x90] sm:$0xff] %v648
      %929 = vst [vmem:[%s261 + $0x98] sm:$0xff] %v649
      %930 = vst [vmem:[%s261 + $0xa0] sm:$0xff] %v650
      %931 = vst [vmem:[%s261 + $0xa8] sm:$0xff] %v651
      %932 = vst [vmem:[%s261 + $0xb0] sm:$0xff] %v652
      %933 = vst [vmem:[%s261 + $0xb8] sm:$0xff] %v653
      %934 = vst [vmem:[%s261 + $0xc0] sm:$0xff] %v654
      %935 = vst [vmem:[%s261 + $0xc8] sm:$0xff] %v655
      %936 = vst [vmem:[%s261 + $0xd0] sm:$0xff] %v656
      %937 = vst [vmem:[%s261 + $0xd8] sm:$0xff] %v657
      %938 = vst [vmem:[%s261 + $0xe0] sm:$0xff] %v658
      %939 = vst [vmem:[%s261 + $0xe8] sm:$0xff] %v659
      %940 = vst [vmem:[%s261 + $0xf0] sm:$0xff] %v660
      %941 = vst [vmem:[%s261 + $0xf8] sm:$0xff] %v661
      %942 = vst [vmem:[%s267] sm:$0xff] %v784
      %943 = vst [vmem:[%s267 + $0x8] sm:$0xff] %v787
      %944 = vst [vmem:[%s267 + $0x10] sm:$0xff] %v792
      %945 = vst [vmem:[%s267 + $0x18] sm:$0xff] %v795
      %946 = vst [vmem:[%s267 + $0x20] sm:$0xff] %v800
      %947 = vst [vmem:[%s267 + $0x28] sm:$0xff] %v803
      %948 = vst [vmem:[%s267 + $0x30] sm:$0xff] %v808
      %949 = vst [vmem:[%s267 + $0x38] sm:$0xff] %v811
      %950 = vst [vmem:[%s267 + $0x40] sm:$0xff] %v816
      %951 = vst [vmem:[%s267 + $0x48] sm:$0xff] %v819
      %952 = vst [vmem:[%s267 + $0x50] sm:$0xff] %v824
      %953 = vst [vmem:[%s267 + $0x58] sm:$0xff] %v827
      %954 = vst [vmem:[%s267 + $0x60] sm:$0xff] %v832
      %955 = vst [vmem:[%s267 + $0x68] sm:$0xff] %v835
      %956 = vst [vmem:[%s267 + $0x70] sm:$0xff] %v840
      %957 = vst [vmem:[%s267 + $0x78] sm:$0xff] %v843
      %958 = vst [vmem:[%s267 + $0x80] sm:$0xff] %v848
      %959 = vst [vmem:[%s267 + $0x88] sm:$0xff] %v851
      %960 = vst [vmem:[%s267 + $0x90] sm:$0xff] %v856
      %961 = vst [vmem:[%s267 + $0x98] sm:$0xff] %v859
      %962 = vst [vmem:[%s267 + $0xa0] sm:$0xff] %v864
      %963 = vst [vmem:[%s267 + $0xa8] sm:$0xff] %v867
      %964 = vst [vmem:[%s267 + $0xb0] sm:$0xff] %v872
      %965 = vst [vmem:[%s267 + $0xb8] sm:$0xff] %v875
      %966 = vst [vmem:[%s267 + $0xc0] sm:$0xff] %v880
      %967 = vst [vmem:[%s267 + $0xc8] sm:$0xff] %v883
      %968 = vst [vmem:[%s267 + $0xd0] sm:$0xff] %v888
      %969 = vst [vmem:[%s267 + $0xd8] sm:$0xff] %v891
      %970 = vst [vmem:[%s267 + $0xe0] sm:$0xff] %v896
      %971 = vst [vmem:[%s267 + $0xe8] sm:$0xff] %v899
      %972 = vst [vmem:[%s267 + $0xf0] sm:$0xff] %v904
      %973 = vst [vmem:[%s267 + $0xf8] sm:$0xff] %v907
      %s974 = smul.u32 32, %s18
      %p975 = scmp.lt.s32.totalorder %s974, 63
      %s976 = scalar_select %p975, %s974, 63
      %s977 = smul.addr %s976, 8
      %s978 = scalar_lea.vmem %s5, %s977
      %s979 = smul.u32 32, %s18
      %p980 = scmp.lt.s32.totalorder %s979, 63
      %s981 = scalar_select %p980, %s979, 63
      %s982 = smul.addr %s981, 8
      %s983 = scalar_lea.vmem %s6, %s982
      // Predicated region
      $region41: #{stanosa_forward.1} parent=39 // pred_check
        %p984 = pneg %p146
      $region42: #{stanosa_forward.1} parent=39 // pred_check_branch
        %986 = sbr.rel (%p984) target = $region44
      $region43: #{stanosa_forward.1} parent=39 // pred_region
        %s987 = smul.u32 32, %s18
      $region44: #{stanosa_forward.1} parent=39 // pred_fallthru
        _
      // Predicated region
      $region45: #{stanosa_forward.1} parent=39 // pred_check
        %p988 = pneg %p172
      $region46: #{stanosa_forward.1} parent=39 // pred_check_branch
        %990 = sbr.rel (%p988) target = $region48
      $region47: #{stanosa_forward.1} parent=39 // pred_region
        %s991 = smul.u32 32, %s18
      $region48: #{stanosa_forward.1} parent=39 // pred_fallthru
        _
    $region40: #{stanosa_forward.1} parent=5 // pred_fallthru
      _
    %p992 = scmp.le.s32.totalorder 2, %s13
    // Predicated region
    $region49: #{stanosa_forward.1} parent=5 // pred_check
      %p993 = pneg %p992
    $region50: #{stanosa_forward.1} parent=5 // pred_check_branch
      %995 = sbr.rel (%p993) target = $region52
    $region51: #{stanosa_forward.1} parent=5 // pred_region
      %s996 = ssub.s32 %s13, 2
      // Predicated region
      $region53: #{stanosa_forward.1} parent=51 // pred_check
        %p997 = pneg %p152
      $region54: #{stanosa_forward.1} parent=51 // pred_check_branch
        %999 = sbr.rel (%p997) target = $region56
      $region55: #{stanosa_forward.1} parent=51 // pred_region
        %s1000 = smul.u32 32, %s19
        %p1001 = scmp.lt.s32.totalorder %s1000, 63
        %s1002 = scalar_select %p1001, %s1000, 63
        %s1003 = smul.addr %s1002, 8
        %s1004 = scalar_lea.vmem %s5, %s1003
      $region56: #{stanosa_forward.1} parent=51 // pred_fallthru
        _
      // Predicated region
      $region57: #{stanosa_forward.1} parent=51 // pred_check
        %p1005 = pneg %p178
      $region58: #{stanosa_forward.1} parent=51 // pred_check_branch
        %1007 = sbr.rel (%p1005) target = $region60
      $region59: #{stanosa_forward.1} parent=51 // pred_region
        %s1008 = smul.u32 32, %s19
        %p1009 = scmp.lt.s32.totalorder %s1008, 63
        %s1010 = scalar_select %p1009, %s1008, 63
        %s1011 = smul.addr %s1010, 8
        %s1012 = scalar_lea.vmem %s6, %s1011
      $region60: #{stanosa_forward.1} parent=51 // pred_fallthru
        _
    $region52: #{stanosa_forward.1} parent=5 // pred_fallthru
      _
  $region6: #{stanosa_forward.1} parent=0 // loop_footer
    %s17 = sadd.s32 1, %s13
  $region7: #{stanosa_forward.1} parent=0 // loop_footer_branch
    %12 = sbr.rel target = $region3
  $region8: #{stanosa_forward.1} parent=0 // loop_exit
    _

// kernel: stanosa_forward.1
$region0: #{stanosa_forward.1}
  #allocation0 [shape = 'u32[]', space=smem, size = 0x4, offset = 0x4, fixed_abs, tag = 'smem constant byte address 0x4 - core index']
  #allocation1 [shape = 'u32[144,128]{1,0:T(1,128)}', space=vmem, size = 0x12000, scoped, tag = 'internal scratch']
  %s0 = inlined_call_operand.vmem [shape: bf16[512,128], index: 0, kind: input, shape index: {}]
  %s1 = inlined_call_operand.vmem [shape: bf16[128,128], index: 1, kind: input, shape index: {}]
  %s2 = inlined_call_operand.vmem [shape: f32[1,128], index: 2, kind: input, shape index: {}]
  %s3 = inlined_call_operand.vmem [shape: bf16[128,128], index: 3, kind: input, shape index: {}]
  %s4 = inlined_call_operand.vmem [shape: f32[1,128], index: 4, kind: input, shape index: {}]
  %s5 = inlined_call_operand.vmem [shape: f32[512,128], index: 5, kind: output, shape index: {0}]
  %s6 = inlined_call_operand.vmem [shape: f32[512,128], index: 6, kind: output, shape index: {1}]
  %7 = xla_tuple %s5, %s6
  %s8 = sld [smem:[#allocation0]]
  $region61: #{stanosa_forward.1} parent=0
    _
  %s10 = ssub.s32 1, %s8
  %s11 = scalar_select 0, %s10, %s8
  loop: start=0, step=1, limit=4
  $region2: #{stanosa_forward.1} parent=0 // loop_pre_header
    _
  $region3: #{stanosa_forward.1} parent=0 // loop_header
    %s13 = sphi 0, %s17
    %p14 = scmp.ge.s32.totalorder %s13, 4
    %s23 = sphi 0, %s25
    %s26 = sphi 0, %s23
    %s27 = sphi 0, %s26
    %s43 = sphi 0, %s27
    %s47 = sphi 0, %s47
    %s49 = sphi 0, %s47
    %s50 = sphi 0, %s49
    %s64 = sphi 0, %s50
    %s68 = sphi 0, %s68
    %s70 = sphi 0, %s68
    %s71 = sphi 0, %s70
    %s85 = sphi 0, %s71
    %s89 = sphi 0, %s89
    %s91 = sphi 0, %s89
    %s92 = sphi 0, %s91
    %s106 = sphi 0, %s92
    %s110 = sphi 0, %s110
    %s112 = sphi 0, %s110
    %s113 = sphi 0, %s112
    %s127 = sphi 0, %s113
    %s133 = sphi 0, %s135
    %s136 = sphi 0, %s133
    %s137 = sphi 0, %s136
    %s153 = sphi 0, %s137
    %s159 = sphi 0, %s161
    %s162 = sphi 0, %s159
    %s163 = sphi 0, %s162
    %s179 = sphi 0, %s163
  $region4: #{stanosa_forward.1} parent=0 // loop_header_branch
    %16 = sbr.rel (%p14) target = $region8
  $region5: #{stanosa_forward.1} parent=0 // loop_body
    %s18 = ssub.s32 %s13, 1
    %s19 = ssub.s32 %s13, 2
    %s20 = sadd.s32 %s13, 1
    %s21 = ssub.s32 %s13, %s20
    %p22 = scmp.eq.s32.totalorder %s21, 0
    %s24 = sadd.s32 %s23, 1
    %s25 = scalar_select %p22, %s23, %s24
    %p28 = pneg %p22
    %p29 = scmp.eq.s32.totalorder %s13, 1
    %p30 = por %p28, %p29
    %p31 = scmp.ne.s32.totalorder %s23, %s26
    %p32 = scmp.eq.s32.totalorder %s13, 0
    %p33 = por %p31, %p32
    %p34 = scmp.ne.s32.totalorder %s23, %s26
    %p35 = scmp.eq.s32.totalorder %s18, 1
    %p36 = por %p34, %p35
    %p37 = scmp.ne.s32.totalorder %s26, %s27
    %p38 = scmp.eq.s32.totalorder %s18, 0
    %p39 = por %p37, %p38
    %p40 = scmp.ne.s32.totalorder %s26, %s27
    %p41 = scmp.eq.s32.totalorder %s19, 1
    %p42 = por %p40, %p41
    %p44 = scmp.ne.s32.totalorder %s27, %s43
    %p45 = scmp.eq.s32.totalorder %s19, 0
    %p46 = por %p44, %p45
    %s48 = sadd.s32 %s47, 1
    %p51 = scmp.eq.s32.totalorder %s13, 1
    %p52 = scmp.ne.s32.totalorder %s47, %s49
    %p53 = scmp.eq.s32.totalorder %s13, 0
    %p54 = por %p52, %p53
    %p55 = scmp.ne.s32.totalorder %s47, %s49
    %p56 = scmp.eq.s32.totalorder %s18, 1
    %p57 = por %p55, %p56
    %p58 = scmp.ne.s32.totalorder %s49, %s50
    %p59 = scmp.eq.s32.totalorder %s18, 0
    %p60 = por %p58, %p59
    %p61 = scmp.ne.s32.totalorder %s49, %s50
    %p62 = scmp.eq.s32.totalorder %s19, 1
    %p63 = por %p61, %p62
    %p65 = scmp.ne.s32.totalorder %s50, %s64
    %p66 = scmp.eq.s32.totalorder %s19, 0
    %p67 = por %p65, %p66
    %s69 = sadd.s32 %s68, 1
    %p72 = scmp.eq.s32.totalorder %s13, 1
    %p73 = scmp.ne.s32.totalorder %s68, %s70
    %p74 = scmp.eq.s32.totalorder %s13, 0
    %p75 = por %p73, %p74
    %p76 = scmp.ne.s32.totalorder %s68, %s70
    %p77 = scmp.eq.s32.totalorder %s18, 1
    %p78 = por %p76, %p77
    %p79 = scmp.ne.s32.totalorder %s70, %s71
    %p80 = scmp.eq.s32.totalorder %s18, 0
    %p81 = por %p79, %p80
    %p82 = scmp.ne.s32.totalorder %s70, %s71
    %p83 = scmp.eq.s32.totalorder %s19, 1
    %p84 = por %p82, %p83
    %p86 = scmp.ne.s32.totalorder %s71, %s85
    %p87 = scmp.eq.s32.totalorder %s19, 0
    %p88 = por %p86, %p87
    %s90 = sadd.s32 %s89, 1
    %p93 = scmp.eq.s32.totalorder %s13, 1
    %p94 = scmp.ne.s32.totalorder %s89, %s91
    %p95 = scmp.eq.s32.totalorder %s13, 0
    %p96 = por %p94, %p95
    %p97 = scmp.ne.s32.totalorder %s89, %s91
    %p98 = scmp.eq.s32.totalorder %s18, 1
    %p99 = por %p97, %p98
    %p100 = scmp.ne.s32.totalorder %s91, %s92
    %p101 = scmp.eq.s32.totalorder %s18, 0
    %p102 = por %p100, %p101
    %p103 = scmp.ne.s32.totalorder %s91, %s92
    %p104 = scmp.eq.s32.totalorder %s19, 1
    %p105 = por %p103, %p104
    %p107 = scmp.ne.s32.totalorder %s92, %s106
    %p108 = scmp.eq.s32.totalorder %s19, 0
    %p109 = por %p107, %p108
    %s111 = sadd.s32 %s110, 1
    %p114 = scmp.eq.s32.totalorder %s13, 1
    %p115 = scmp.ne.s32.totalorder %s110, %s112
    %p116 = scmp.eq.s32.totalorder %s13, 0
    %p117 = por %p115, %p116
    %p118 = scmp.ne.s32.totalorder %s110, %s112
    %p119 = scmp.eq.s32.totalorder %s18, 1
    %p120 = por %p118, %p119
    %p121 = scmp.ne.s32.totalorder %s112, %s113
    %p122 = scmp.eq.s32.totalorder %s18, 0
    %p123 = por %p121, %p122
    %p124 = scmp.ne.s32.totalorder %s112, %s113
    %p125 = scmp.eq.s32.totalorder %s19, 1
    %p126 = por %p124, %p125
    %p128 = scmp.ne.s32.totalorder %s113, %s127
    %p129 = scmp.eq.s32.totalorder %s19, 0
    %p130 = por %p128, %p129
    %s131 = ssub.s32 %s13, %s20
    %p132 = scmp.eq.s32.totalorder %s131, 0
    %s134 = sadd.s32 %s133, 1
    %s135 = scalar_select %p132, %s133, %s134
    %p138 = pneg %p132
    %p139 = scmp.eq.s32.totalorder %s13, 1
    %p140 = por %p138, %p139
    %p141 = scmp.ne.s32.totalorder %s133, %s136
    %p142 = scmp.eq.s32.totalorder %s13, 0
    %p143 = por %p141, %p142
    %p144 = scmp.ne.s32.totalorder %s133, %s136
    %p145 = scmp.eq.s32.totalorder %s18, 1
    %p146 = por %p144, %p145
    %p147 = scmp.ne.s32.totalorder %s136, %s137
    %p148 = scmp.eq.s32.totalorder %s18, 0
    %p149 = por %p147, %p148
    %p150 = scmp.ne.s32.totalorder %s136, %s137
    %p151 = scmp.eq.s32.totalorder %s19, 1
    %p152 = por %p150, %p151
    %p154 = scmp.ne.s32.totalorder %s137, %s153
    %p155 = scmp.eq.s32.totalorder %s19, 0
    %p156 = por %p154, %p155
    %s157 = ssub.s32 %s13, %s20
    %p158 = scmp.eq.s32.totalorder %s157, 0
    %s160 = sadd.s32 %s159, 1
    %s161 = scalar_select %p158, %s159, %s160
    %p164 = pneg %p158
    %p165 = scmp.eq.s32.totalorder %s13, 1
    %p166 = por %p164, %p165
    %p167 = scmp.ne.s32.totalorder %s159, %s162
    %p168 = scmp.eq.s32.totalorder %s13, 0
    %p169 = por %p167, %p168
    %p170 = scmp.ne.s32.totalorder %s159, %s162
    %p171 = scmp.eq.s32.totalorder %s18, 1
    %p172 = por %p170, %p171
    %p173 = scmp.ne.s32.totalorder %s162, %s163
    %p174 = scmp.eq.s32.totalorder %s18, 0
    %p175 = por %p173, %p174
    %p176 = scmp.ne.s32.totalorder %s162, %s163
    %p177 = scmp.eq.s32.totalorder %s19, 1
    %p178 = por %p176, %p177
    %p180 = scmp.ne.s32.totalorder %s163, %s179
    %p181 = scmp.eq.s32.totalorder %s19, 0
    %p182 = por %p180, %p181
    %p183 = scmp.le.s32.totalorder 1, %s13
    %p184 = scmp.lt.s32.totalorder %s13, 3
    %p185 = pnand %p183, %p184
    %p186 = pneg %p185
    // Predicated region
    $region9: #{stanosa_forward.1} parent=5 // pred_check
      _
    $region10: #{stanosa_forward.1} parent=5 // pred_check_branch
      %188 = sbr.rel (%p185) target = $region12
    $region11: #{stanosa_forward.1} parent=5 // pred_region
      %s189 = ssub.s32 %s13, 1
      // Predicated region
      $region13: #{stanosa_forward.1} parent=11 // pred_check
        %p190 = pneg %p60
      $region14: #{stanosa_forward.1} parent=11 // pred_check_branch
        %192 = sbr.rel (%p190) target = $region16
      $region15: #{stanosa_forward.1} parent=11 // pred_region
        _
      $region16: #{stanosa_forward.1} parent=11 // pred_fallthru
        _
      // Predicated region
      $region17: #{stanosa_forward.1} parent=11 // pred_check
        %p193 = pneg %p81
      $region18: #{stanosa_forward.1} parent=11 // pred_check_branch
        %195 = sbr.rel (%p193) target = $region20
      $region19: #{stanosa_forward.1} parent=11 // pred_region
        _
      $region20: #{stanosa_forward.1} parent=11 // pred_fallthru
        _
      // Predicated region
      $region21: #{stanosa_forward.1} parent=11 // pred_check
        %p196 = pneg %p102
      $region22: #{stanosa_forward.1} parent=11 // pred_check_branch
        %198 = sbr.rel (%p196) target = $region24
      $region23: #{stanosa_forward.1} parent=11 // pred_region
        _
      $region24: #{stanosa_forward.1} parent=11 // pred_fallthru
        _
      // Predicated region
      $region25: #{stanosa_forward.1} parent=11 // pred_check
        %p199 = pneg %p123
      $region26: #{stanosa_forward.1} parent=11 // pred_check_branch
        %201 = sbr.rel (%p199) target = $region28
      $region27: #{stanosa_forward.1} parent=11 // pred_region
        _
      $region28: #{stanosa_forward.1} parent=11 // pred_fallthru
        _
    $region12: #{stanosa_forward.1} parent=5 // pred_fallthru
      _
    %p202 = scmp.lt.s32.totalorder %s13, 2
    // Predicated region
    $region29: #{stanosa_forward.1} parent=5 // pred_check
      %p203 = pneg %p202
    $region30: #{stanosa_forward.1} parent=5 // pred_check_branch
      %205 = sbr.rel (%p203) target = $region32
    $region31: #{stanosa_forward.1} parent=5 // pred_region
      // Predicated region
      $region33: #{stanosa_forward.1} parent=31 // pred_check
        %p206 = pneg %p33
      $region34: #{stanosa_forward.1} parent=31 // pred_check_branch
        %208 = sbr.rel (%p206) target = $region36
      $region35: #{stanosa_forward.1} parent=31 // pred_region
        %s209 = smul.u32 32, %s13
        %p210 = scmp.lt.s32.totalorder %s209, 63
        %s211 = scalar_select %p210, %s209, 63
        %s212 = smul.addr %s211, 4
        %s213 = scalar_lea.vmem %s0, %s212
        %s214 = smul.u32 32, %s13
      $region36: #{stanosa_forward.1} parent=31 // pred_fallthru
        _
    $region32: #{stanosa_forward.1} parent=5 // pred_fallthru
      _
    %p215 = scmp.le.s32.totalorder 1, %s13
    %p216 = scmp.lt.s32.totalorder %s13, 3
    %p217 = pnand %p215, %p216
    %p218 = pneg %p217
    // Predicated region
    $region37: #{stanosa_forward.1} parent=5 // pred_check
      _
    $region38: #{stanosa_forward.1} parent=5 // pred_check_branch
      %220 = sbr.rel (%p217) target = $region40
    $region39: #{stanosa_forward.1} parent=5 // pred_region
      %s221 = ssub.s32 %s13, 1
      %s222 = smul.u32 32, %s18
      %p223 = scmp.lt.s32.totalorder %s222, 63
      %s224 = scalar_select %p223, %s222, 63
      %s225 = smul.addr %s224, 4
      %s226 = scalar_lea.vmem %s0, %s225
      %p227 = pneg %p39
      %p228 = pneg %p36
      %p229 = pneg %p60
      %p230 = pneg %p57
      %p231 = pneg %p81
      %p232 = pneg %p78
      %p233 = pneg %p102
      %p234 = pneg %p99
      %p235 = pneg %p123
      %p236 = pneg %p120
      %p237 = pneg %p149
      %p238 = pneg %p146
      %s239 = smul.u32 32, %s18
      %p240 = scmp.lt.s32.totalorder %s239, 63
      %s241 = scalar_select %p240, %s239, 63
      %s242 = smul.addr %s241, 8
      %s243 = scalar_lea.vmem %s5, %s242
      %p244 = pneg %p175
      %p245 = pneg %p172
      %s246 = smul.u32 32, %s18
      %p247 = scmp.lt.s32.totalorder %s246, 63
      %s248 = scalar_select %p247, %s246, 63
      %s249 = smul.addr %s248, 8
      %s250 = scalar_lea.vmem %s6, %s249
      %s251 = smul.u32 32, %s18
      %p252 = scmp.lt.s32.totalorder %s251, 63
      %s253 = scalar_select %p252, %s251, 63
      %s254 = smul.addr %s253, 4
      %s255 = scalar_lea.vmem %s0, %s254
      %s256 = smul.u32 32, %s18
      %s257 = smul.u32 32, %s18
      %p258 = scmp.lt.s32.totalorder %s257, 63
      %s259 = scalar_select %p258, %s257, 63
      %s260 = smul.addr %s259, 8
      %s261 = scalar_lea.vmem %s5, %s260
      %s262 = smul.u32 32, %s18
      %s263 = smul.u32 32, %s18
      %p264 = scmp.lt.s32.totalorder %s263, 63
      %s265 = scalar_select %p264, %s263, 63
      %s266 = smul.addr %s265, 8
      %s267 = scalar_lea.vmem %s6, %s266
      %s268 = smul.u32 32, %s18
      %v270 = vld [vmem:[%s255] sm:$0xf]
      %v271 = vld [vmem:[%s255 + $0x4] sm:$0xf]
      %v272 = vld [vmem:[%s255 + $0x8] sm:$0xf]
      %v273 = vld [vmem:[%s255 + $0xc] sm:$0xf]
      %v274 = vld [vmem:[%s255 + $0x10] sm:$0xf]
      %v275 = vld [vmem:[%s255 + $0x14] sm:$0xf]
      %v276 = vld [vmem:[%s255 + $0x18] sm:$0xf]
      %v277 = vld [vmem:[%s255 + $0x1c] sm:$0xf]
      %v278 = vld [vmem:[%s255 + $0x20] sm:$0xf]
      %v279 = vld [vmem:[%s255 + $0x24] sm:$0xf]
      %v280 = vld [vmem:[%s255 + $0x28] sm:$0xf]
      %v281 = vld [vmem:[%s255 + $0x2c] sm:$0xf]
      %v282 = vld [vmem:[%s255 + $0x30] sm:$0xf]
      %v283 = vld [vmem:[%s255 + $0x34] sm:$0xf]
      %v284 = vld [vmem:[%s255 + $0x38] sm:$0xf]
      %v285 = vld [vmem:[%s255 + $0x3c] sm:$0xf]
      %v286 = vld [vmem:[%s255 + $0x40] sm:$0xf]
      %v287 = vld [vmem:[%s255 + $0x44] sm:$0xf]
      %v288 = vld [vmem:[%s255 + $0x48] sm:$0xf]
      %v289 = vld [vmem:[%s255 + $0x4c] sm:$0xf]
      %v290 = vld [vmem:[%s255 + $0x50] sm:$0xf]
      %v291 = vld [vmem:[%s255 + $0x54] sm:$0xf]
      %v292 = vld [vmem:[%s255 + $0x58] sm:$0xf]
      %v293 = vld [vmem:[%s255 + $0x5c] sm:$0xf]
      %v294 = vld [vmem:[%s255 + $0x60] sm:$0xf]
      %v295 = vld [vmem:[%s255 + $0x64] sm:$0xf]
      %v296 = vld [vmem:[%s255 + $0x68] sm:$0xf]
      %v297 = vld [vmem:[%s255 + $0x6c] sm:$0xf]
      %v298 = vld [vmem:[%s255 + $0x70] sm:$0xf]
      %v299 = vld [vmem:[%s255 + $0x74] sm:$0xf]
      %v300 = vld [vmem:[%s255 + $0x78] sm:$0xf]
      %v301 = vld [vmem:[%s255 + $0x7c] sm:$0xf]
      %v302 = vld [vmem:[%s1] sm:$0xf]
      %v303 = vld [vmem:[%s1 + $0x4] sm:$0xf]
      %v304 = vld [vmem:[%s1 + $0x8] sm:$0xf]
      %v305 = vld [vmem:[%s1 + $0xc] sm:$0xf]
      %v306 = vld [vmem:[%s1 + $0x10] sm:$0xf]
      %v307 = vld [vmem:[%s1 + $0x14] sm:$0xf]
      %v308 = vld [vmem:[%s1 + $0x18] sm:$0xf]
      %v309 = vld [vmem:[%s1 + $0x1c] sm:$0xf]
      %v310 = vld [vmem:[%s1 + $0x20] sm:$0xf]
      %v311 = vld [vmem:[%s1 + $0x24] sm:$0xf]
      %v312 = vld [vmem:[%s1 + $0x28] sm:$0xf]
      %v313 = vld [vmem:[%s1 + $0x2c] sm:$0xf]
      %v314 = vld [vmem:[%s1 + $0x30] sm:$0xf]
      %v315 = vld [vmem:[%s1 + $0x34] sm:$0xf]
      %v316 = vld [vmem:[%s1 + $0x38] sm:$0xf]
      %v317 = vld [vmem:[%s1 + $0x3c] sm:$0xf]
      %v318 = vld [vmem:[%s2] sm:$0x1]
      %v320 = vlaneseq
      %v321 = vshrl.u32 %v320, 7
      %v322 = vsub.s32 0, %v321
      %v323 = vrot.slane %v318, %v322
      %v357 = vunpack.c.l.b16 %v270
      %v358 = vunpack.c.l.b16 %v271
      %v359 = vunpack.c.l.b16 %v272
      %v360 = vunpack.c.l.b16 %v273
      %v361 = vunpack.c.l.b16 %v274
      %v362 = vunpack.c.l.b16 %v275
      %v363 = vunpack.c.l.b16 %v276
      %v364 = vunpack.c.l.b16 %v277
      %v365 = vunpack.c.l.b16 %v278
      %v366 = vunpack.c.l.b16 %v279
      %v367 = vunpack.c.l.b16 %v280
      %v368 = vunpack.c.l.b16 %v281
      %v369 = vunpack.c.l.b16 %v282
      %v370 = vunpack.c.l.b16 %v283
      %v371 = vunpack.c.l.b16 %v284
      %v372 = vunpack.c.l.b16 %v285
      %v373 = vunpack.c.l.b16 %v286
      %v374 = vunpack.c.l.b16 %v287
      %v375 = vunpack.c.l.b16 %v288
      %v376 = vunpack.c.l.b16 %v289
      %v377 = vunpack.c.l.b16 %v290
      %v378 = vunpack.c.l.b16 %v291
      %v379 = vunpack.c.l.b16 %v292
      %v380 = vunpack.c.l.b16 %v293
      %v381 = vunpack.c.l.b16 %v294
      %v382 = vunpack.c.l.b16 %v295
      %v383 = vunpack.c.l.b16 %v296
      %v384 = vunpack.c.l.b16 %v297
      %v385 = vunpack.c.l.b16 %v298
      %v386 = vunpack.c.l.b16 %v299
      %v387 = vunpack.c.l.b16 %v300
      %v388 = vunpack.c.l.b16 %v301
      %v389 = vpack.c.b16 %v358, %v357
      %v390 = vpack.c.b16 %v360, %v359
      %v391 = vpack.c.b16 %v362, %v361
      %v392 = vpack.c.b16 %v364, %v363
      %v393 = vpack.c.b16 %v366, %v365
      %v394 = vpack.c.b16 %v368, %v367
      %v395 = vpack.c.b16 %v370, %v369
      %v396 = vpack.c.b16 %v372, %v371
      %v397 = vpack.c.b16 %v374, %v373
      %v398 = vpack.c.b16 %v376, %v375
      %v399 = vpack.c.b16 %v378, %v377
      %v400 = vpack.c.b16 %v380, %v379
      %v401 = vpack.c.b16 %v382, %v381
      %v402 = vpack.c.b16 %v384, %v383
      %v403 = vpack.c.b16 %v386, %v385
      %v404 = vpack.c.b16 %v388, %v387
      %v437 = vunpack.c.l.b16 %v302
      %v438 = vunpack.c.l.b16 %v303
      %v439 = vunpack.c.l.b16 %v304
      %v440 = vunpack.c.l.b16 %v305
      %v441 = vunpack.c.l.b16 %v306
      %v442 = vunpack.c.l.b16 %v307
      %v443 = vunpack.c.l.b16 %v308
      %v444 = vunpack.c.l.b16 %v309
      %v445 = vunpack.c.l.b16 %v310
      %v446 = vunpack.c.l.b16 %v311
      %v447 = vunpack.c.l.b16 %v312
      %v448 = vunpack.c.l.b16 %v313
      %v449 = vunpack.c.l.b16 %v314
      %v450 = vunpack.c.l.b16 %v315
      %v451 = vunpack.c.l.b16 %v316
      %v452 = vunpack.c.l.b16 %v317
      %v453 = vpack.c.b16 %v438, %v437
      %v454 = vpack.c.b16 %v440, %v439
      %v455 = vpack.c.b16 %v442, %v441
      %v456 = vpack.c.b16 %v444, %v443
      %v457 = vpack.c.b16 %v446, %v445
      %v458 = vpack.c.b16 %v448, %v447
      %v459 = vpack.c.b16 %v450, %v449
      %v460 = vpack.c.b16 %v452, %v451
      %469 = vmatprep.subr.bf16.mxu0 0
      %470 = vmatpush1.bf16.msra.mxu0 %v453
      %471 = vmatprep.subr.bf16.mxu0 0
      %472 = vmatpush1.bf16.msra.mxu0 %v454
      %473 = vmatprep.subr.bf16.mxu0 0
      %474 = vmatpush1.bf16.msra.mxu0 %v455
      %475 = vmatprep.subr.bf16.mxu0 0
      %476 = vmatpush1.bf16.msra.mxu0 %v456
      %477 = vmatprep.subr.bf16.mxu0 0
      %478 = vmatpush1.bf16.msra.mxu0 %v457
      %479 = vmatprep.subr.bf16.mxu0 0
      %480 = vmatpush1.bf16.msra.mxu0 %v458
      %481 = vmatprep.subr.bf16.mxu0 0
      %482 = vmatpush1.bf16.msra.mxu0 %v459
      %483 = vmatprep.subr.bf16.mxu0 0
      %484 = vmatpush1.bf16.msra.mxu0 %v460
      %485 = vmatprep.subr.bf16.mxu0 0
      %486 = vmatpush1.bf16.msra.mxu0 0
      %487 = vmatprep.subr.bf16.mxu0 0
      %488 = vmatpush1.bf16.msra.mxu0 0
      %489 = vmatprep.subr.bf16.mxu0 0
      %490 = vmatpush1.bf16.msra.mxu0 0
      %491 = vmatprep.subr.bf16.mxu0 0
      %492 = vmatpush1.bf16.msra.mxu0 0
      %493 = vmatprep.subr.bf16.mxu0 0
      %494 = vmatpush1.bf16.msra.mxu0 0
      %495 = vmatprep.subr.bf16.mxu0 0
      %496 = vmatpush1.bf16.msra.mxu0 0
      %497 = vmatprep.subr.bf16.mxu0 0
      %498 = vmatpush1.bf16.msra.mxu0 0
      %499 = vmatprep.subr.bf16.mxu0 0
      %500 = vmatpush1.bf16.msra.mxu0 0
      %501 = vmatprep.mubr.bf16.mxu0 0
      %502 = vmatmul.mubr.bf16.gmra.mrb[0].mxu0 %v389
      %v503 = vpop.f32.mrb[0].mxu0
      %v504 = vadd.f32 %v323, %v503
      %v505 = vpop.f32.mrb[0].mxu0
      %v506 = vpop.f32.mrb[0].mxu0
      %v507 = vadd.f32 %v323, %v506
      %v508 = vpop.f32.mrb[0].mxu0
      %509 = vmatprep.mubr.bf16.mxu0 0
      %510 = vmatmul.mubr.bf16.gmra.mrb[0].mxu0 %v390
      %v511 = vpop.f32.mrb[0].mxu0
      %v512 = vadd.f32 %v323, %v511
      %v513 = vpop.f32.mrb[0].mxu0
      %v514 = vpop.f32.mrb[0].mxu0
      %v515 = vadd.f32 %v323, %v514
      %v516 = vpop.f32.mrb[0].mxu0
      %517 = vmatprep.mubr.bf16.mxu0 0
      %518 = vmatmul.mubr.bf16.gmra.mrb[0].mxu0 %v391
      %v519 = vpop.f32.mrb[0].mxu0
      %v520 = vadd.f32 %v323, %v519
      %v521 = vpop.f32.mrb[0].mxu0
      %v522 = vpop.f32.mrb[0].mxu0
      %v523 = vadd.f32 %v323, %v522
      %v524 = vpop.f32.mrb[0].mxu0
      %525 = vmatprep.mubr.bf16.mxu0 0
      %526 = vmatmul.mubr.bf16.gmra.mrb[0].mxu0 %v392
      %v527 = vpop.f32.mrb[0].mxu0
      %v528 = vadd.f32 %v323, %v527
      %v529 = vpop.f32.mrb[0].mxu0
      %v530 = vpop.f32.mrb[0].mxu0
      %v531 = vadd.f32 %v323, %v530
      %v532 = vpop.f32.mrb[0].mxu0
      %533 = vmatprep.mubr.bf16.mxu0 0
      %534 = vmatmul.mubr.bf16.gmra.mrb[0].mxu0 %v393
      %v535 = vpop.f32.mrb[0].mxu0
      %v536 = vadd.f32 %v323, %v535
      %v537 = vpop.f32.mrb[0].mxu0
      %v538 = vpop.f32.mrb[0].mxu0
      %v539 = vadd.f32 %v323, %v538
      %v540 = vpop.f32.mrb[0].mxu0
      %541 = vmatprep.mubr.bf16.mxu0 0
      %542 = vmatmul.mubr.bf16.gmra.mrb[0].mxu0 %v394
      %v543 = vpop.f32.mrb[0].mxu0
      %v544 = vadd.f32 %v323, %v543
      %v545 = vpop.f32.mrb[0].mxu0
      %v546 = vpop.f32.mrb[0].mxu0
      %v547 = vadd.f32 %v323, %v546
      %v548 = vpop.f32.mrb[0].mxu0
      %549 = vmatprep.mubr.bf16.mxu0 0
      %550 = vmatmul.mubr.bf16.gmra.mrb[0].mxu0 %v395
      %v551 = vpop.f32.mrb[0].mxu0
      %v552 = vadd.f32 %v323, %v551
      %v553 = vpop.f32.mrb[0].mxu0
      %v554 = vpop.f32.mrb[0].mxu0
      %v555 = vadd.f32 %v323, %v554
      %v556 = vpop.f32.mrb[0].mxu0
      %557 = vmatprep.mubr.bf16.mxu0 0
      %558 = vmatmul.mubr.bf16.gmra.mrb[0].mxu0 %v396
      %v559 = vpop.f32.mrb[0].mxu0
      %v560 = vadd.f32 %v323, %v559
      %v561 = vpop.f32.mrb[0].mxu0
      %v562 = vpop.f32.mrb[0].mxu0
      %v563 = vadd.f32 %v323, %v562
      %v564 = vpop.f32.mrb[0].mxu0
      %565 = vmatprep.mubr.bf16.mxu0 0
      %566 = vmatmul.mubr.bf16.gmra.mrb[0].mxu0 %v397
      %v567 = vpop.f32.mrb[0].mxu0
      %v568 = vadd.f32 %v323, %v567
      %v569 = vpop.f32.mrb[0].mxu0
      %v570 = vpop.f32.mrb[0].mxu0
      %v571 = vadd.f32 %v323, %v570
      %v572 = vpop.f32.mrb[0].mxu0
      %573 = vmatprep.mubr.bf16.mxu0 0
      %574 = vmatmul.mubr.bf16.gmra.mrb[0].mxu0 %v398
      %v575 = vpop.f32.mrb[0].mxu0
      %v576 = vadd.f32 %v323, %v575
      %v577 = vpop.f32.mrb[0].mxu0
      %v578 = vpop.f32.mrb[0].mxu0
      %v579 = vadd.f32 %v323, %v578
      %v580 = vpop.f32.mrb[0].mxu0
      %581 = vmatprep.mubr.bf16.mxu0 0
      %582 = vmatmul.mubr.bf16.gmra.mrb[0].mxu0 %v399
      %v583 = vpop.f32.mrb[0].mxu0
      %v584 = vadd.f32 %v323, %v583
      %v585 = vpop.f32.mrb[0].mxu0
      %v586 = vpop.f32.mrb[0].mxu0
      %v587 = vadd.f32 %v323, %v586
      %v588 = vpop.f32.mrb[0].mxu0
      %589 = vmatprep.mubr.bf16.mxu0 0
      %590 = vmatmul.mubr.bf16.gmra.mrb[0].mxu0 %v400
      %v591 = vpop.f32.mrb[0].mxu0
      %v592 = vadd.f32 %v323, %v591
      %v593 = vpop.f32.mrb[0].mxu0
      %v594 = vpop.f32.mrb[0].mxu0
      %v595 = vadd.f32 %v323, %v594
      %v596 = vpop.f32.mrb[0].mxu0
      %597 = vmatprep.mubr.bf16.mxu0 0
      %598 = vmatmul.mubr.bf16.gmra.mrb[0].mxu0 %v401
      %v599 = vpop.f32.mrb[0].mxu0
      %v600 = vadd.f32 %v323, %v599
      %v601 = vpop.f32.mrb[0].mxu0
      %v602 = vpop.f32.mrb[0].mxu0
      %v603 = vadd.f32 %v323, %v602
      %v604 = vpop.f32.mrb[0].mxu0
      %605 = vmatprep.mubr.bf16.mxu0 0
      %606 = vmatmul.mubr.bf16.gmra.mrb[0].mxu0 %v402
      %v607 = vpop.f32.mrb[0].mxu0
      %v608 = vadd.f32 %v323, %v607
      %v609 = vpop.f32.mrb[0].mxu0
      %v610 = vpop.f32.mrb[0].mxu0
      %v611 = vadd.f32 %v323, %v610
      %v612 = vpop.f32.mrb[0].mxu0
      %613 = vmatprep.mubr.bf16.mxu0 0
      %614 = vmatmul.mubr.bf16.gmra.mrb[0].mxu0 %v403
      %v615 = vpop.f32.mrb[0].mxu0
      %v616 = vadd.f32 %v323, %v615
      %v617 = vpop.f32.mrb[0].mxu0
      %v618 = vpop.f32.mrb[0].mxu0
      %v619 = vadd.f32 %v323, %v618
      %v620 = vpop.f32.mrb[0].mxu0
      %621 = vmatprep.mubr.bf16.mxu0 0
      %622 = vmatmul.mubr.bf16.gmra.mrb[0].mxu0 %v404
      %v623 = vpop.f32.mrb[0].mxu0
      %v624 = vadd.f32 %v323, %v623
      %v625 = vpop.f32.mrb[0].mxu0
      %v626 = vpop.f32.mrb[0].mxu0
      %v627 = vadd.f32 %v323, %v626
      %v628 = vpop.f32.mrb[0].mxu0
      %629 = vdwg.mxu0
      %v630 = vtanh.pop %v504
      %v631 = vtanh.pop %v507
      %v632 = vtanh.pop %v512
      %v633 = vtanh.pop %v515
      %v634 = vtanh.pop %v520
      %v635 = vtanh.pop %v523
      %v636 = vtanh.pop %v528
      %v637 = vtanh.pop %v531
      %v638 = vtanh.pop %v536
      %v639 = vtanh.pop %v539
      %v640 = vtanh.pop %v544
      %v641 = vtanh.pop %v547
      %v642 = vtanh.pop %v552
      %v643 = vtanh.pop %v555
      %v644 = vtanh.pop %v560
      %v645 = vtanh.pop %v563
      %v646 = vtanh.pop %v568
      %v647 = vtanh.pop %v571
      %v648 = vtanh.pop %v576
      %v649 = vtanh.pop %v579
      %v650 = vtanh.pop %v584
      %v651 = vtanh.pop %v587
      %v652 = vtanh.pop %v592
      %v653 = vtanh.pop %v595
      %v654 = vtanh.pop %v600
      %v655 = vtanh.pop %v603
      %v656 = vtanh.pop %v608
      %v657 = vtanh.pop %v611
      %v658 = vtanh.pop %v616
      %v659 = vtanh.pop %v619
      %v660 = vtanh.pop %v624
      %v661 = vtanh.pop %v627
      %v662 = vpack.c.bf16 %v631, %v630
      %v663 = vpack.c.bf16 %v633, %v632
      %v664 = vpack.c.bf16 %v635, %v634
      %v665 = vpack.c.bf16 %v637, %v636
      %v666 = vpack.c.bf16 %v639, %v638
      %v667 = vpack.c.bf16 %v641, %v640
      %v668 = vpack.c.bf16 %v643, %v642
      %v669 = vpack.c.bf16 %v645, %v644
      %v670 = vpack.c.bf16 %v647, %v646
      %v671 = vpack.c.bf16 %v649, %v648
      %v672 = vpack.c.bf16 %v651, %v650
      %v673 = vpack.c.bf16 %v653, %v652
      %v674 = vpack.c.bf16 %v655, %v654
      %v675 = vpack.c.bf16 %v657, %v656
      %v676 = vpack.c.bf16 %v659, %v658
      %v677 = vpack.c.bf16 %v661, %v660
      %v678 = vld [vmem:[%s3] sm:$0xf]
      %v679 = vld [vmem:[%s3 + $0x4] sm:$0xf]
      %v680 = vld [vmem:[%s3 + $0x8] sm:$0xf]
      %v681 = vld [vmem:[%s3 + $0xc] sm:$0xf]
      %v682 = vld [vmem:[%s3 + $0x10] sm:$0xf]
      %v683 = vld [vmem:[%s3 + $0x14] sm:$0xf]
      %v684 = vld [vmem:[%s3 + $0x18] sm:$0xf]
      %v685 = vld [vmem:[%s3 + $0x1c] sm:$0xf]
      %v686 = vld [vmem:[%s3 + $0x20] sm:$0xf]
      %v687 = vld [vmem:[%s3 + $0x24] sm:$0xf]
      %v688 = vld [vmem:[%s3 + $0x28] sm:$0xf]
      %v689 = vld [vmem:[%s3 + $0x2c] sm:$0xf]
      %v690 = vld [vmem:[%s3 + $0x30] sm:$0xf]
      %v691 = vld [vmem:[%s3 + $0x34] sm:$0xf]
      %v692 = vld [vmem:[%s3 + $0x38] sm:$0xf]
      %v693 = vld [vmem:[%s3 + $0x3c] sm:$0xf]
      %v694 = vld [vmem:[%s4] sm:$0x1]
      %v696 = vlaneseq
      %v697 = vshrl.u32 %v696, 7
      %v698 = vsub.s32 0, %v697
      %v699 = vrot.slane %v694, %v698
      %v717 = vunpack.c.l.b16 %v678
      %v718 = vunpack.c.l.b16 %v679
      %v719 = vunpack.c.l.b16 %v680
      %v720 = vunpack.c.l.b16 %v681
      %v721 = vunpack.c.l.b16 %v682
      %v722 = vunpack.c.l.b16 %v683
      %v723 = vunpack.c.l.b16 %v684
      %v724 = vunpack.c.l.b16 %v685
      %v725 = vunpack.c.l.b16 %v686
      %v726 = vunpack.c.l.b16 %v687
      %v727 = vunpack.c.l.b16 %v688
      %v728 = vunpack.c.l.b16 %v689
      %v729 = vunpack.c.l.b16 %v690
      %v730 = vunpack.c.l.b16 %v691
      %v731 = vunpack.c.l.b16 %v692
      %v732 = vunpack.c.l.b16 %v693
      %v733 = vpack.c.b16 %v718, %v717
      %v734 = vpack.c.b16 %v720, %v719
      %v735 = vpack.c.b16 %v722, %v721
      %v736 = vpack.c.b16 %v724, %v723
      %v737 = vpack.c.b16 %v726, %v725
      %v738 = vpack.c.b16 %v728, %v727
      %v739 = vpack.c.b16 %v730, %v729
      %v740 = vpack.c.b16 %v732, %v731
      %749 = vmatprep.subr.bf16.mxu0 0
      %750 = vmatpush1.bf16.msra.mxu0 %v733
      %751 = vmatprep.subr.bf16.mxu0 0
      %752 = vmatpush1.bf16.msra.mxu0 %v734
      %753 = vmatprep.subr.bf16.mxu0 0
      %754 = vmatpush1.bf16.msra.mxu0 %v735
      %755 = vmatprep.subr.bf16.mxu0 0
      %756 = vmatpush1.bf16.msra.mxu0 %v736
      %757 = vmatprep.subr.bf16.mxu0 0
      %758 = vmatpush1.bf16.msra.mxu0 %v737
      %759 = vmatprep.subr.bf16.mxu0 0
      %760 = vmatpush1.bf16.msra.mxu0 %v738
      %761 = vmatprep.subr.bf16.mxu0 0
      %762 = vmatpush1.bf16.msra.mxu0 %v739
      %763 = vmatprep.subr.bf16.mxu0 0
      %764 = vmatpush1.bf16.msra.mxu0 %v740
      %765 = vmatprep.subr.bf16.mxu0 0
      %766 = vmatpush1.bf16.msra.mxu0 0
      %767 = vmatprep.subr.bf16.mxu0 0
      %768 = vmatpush1.bf16.msra.mxu0 0
      %769 = vmatprep.subr.bf16.mxu0 0
      %770 = vmatpush1.bf16.msra.mxu0 0
      %771 = vmatprep.subr.bf16.mxu0 0
      %772 = vmatpush1.bf16.msra.mxu0 0
      %773 = vmatprep.subr.bf16.mxu0 0
      %774 = vmatpush1.bf16.msra.mxu0 0
      %775 = vmatprep.subr.bf16.mxu0 0
      %776 = vmatpush1.bf16.msra.mxu0 0
      %777 = vmatprep.subr.bf16.mxu0 0
      %778 = vmatpush1.bf16.msra.mxu0 0
      %779 = vmatprep.subr.bf16.mxu0 0
      %780 = vmatpush1.bf16.msra.mxu0 0
      %781 = vmatprep.mubr.bf16.mxu0 0
      %782 = vmatmul.mubr.bf16.gmra.mrb[0].mxu0 %v662
      %v783 = vpop.f32.mrb[0].mxu0
      %v784 = vadd.f32 %v699, %v783
      %v785 = vpop.f32.mrb[0].mxu0
      %v786 = vpop.f32.mrb[0].mxu0
      %v787 = vadd.f32 %v699, %v786
      %v788 = vpop.f32.mrb[0].mxu0
      %789 = vmatprep.mubr.bf16.mxu0 0
      %790 = vmatmul.mubr.bf16.gmra.mrb[0].mxu0 %v663
      %v791 = vpop.f32.mrb[0].mxu0
      %v792 = vadd.f32 %v699, %v791
      %v793 = vpop.f32.mrb[0].mxu0
      %v794 = vpop.f32.mrb[0].mxu0
      %v795 = vadd.f32 %v699, %v794
      %v796 = vpop.f32.mrb[0].mxu0
      %797 = vmatprep.mubr.bf16.mxu0 0
      %798 = vmatmul.mubr.bf16.gmra.mrb[0].mxu0 %v664
      %v799 = vpop.f32.mrb[0].mxu0
      %v800 = vadd.f32 %v699, %v799
      %v801 = vpop.f32.mrb[0].mxu0
      %v802 = vpop.f32.mrb[0].mxu0
      %v803 = vadd.f32 %v699, %v802
      %v804 = vpop.f32.mrb[0].mxu0
      %805 = vmatprep.mubr.bf16.mxu0 0
      %806 = vmatmul.mubr.bf16.gmra.mrb[0].mxu0 %v665
      %v807 = vpop.f32.mrb[0].mxu0
      %v808 = vadd.f32 %v699, %v807
      %v809 = vpop.f32.mrb[0].mxu0
      %v810 = vpop.f32.mrb[0].mxu0
      %v811 = vadd.f32 %v699, %v810
      %v812 = vpop.f32.mrb[0].mxu0
      %813 = vmatprep.mubr.bf16.mxu0 0
      %814 = vmatmul.mubr.bf16.gmra.mrb[0].mxu0 %v666
      %v815 = vpop.f32.mrb[0].mxu0
      %v816 = vadd.f32 %v699, %v815
      %v817 = vpop.f32.mrb[0].mxu0
      %v818 = vpop.f32.mrb[0].mxu0
      %v819 = vadd.f32 %v699, %v818
      %v820 = vpop.f32.mrb[0].mxu0
      %821 = vmatprep.mubr.bf16.mxu0 0
      %822 = vmatmul.mubr.bf16.gmra.mrb[0].mxu0 %v667
      %v823 = vpop.f32.mrb[0].mxu0
      %v824 = vadd.f32 %v699, %v823
      %v825 = vpop.f32.mrb[0].mxu0
      %v826 = vpop.f32.mrb[0].mxu0
      %v827 = vadd.f32 %v699, %v826
      %v828 = vpop.f32.mrb[0].mxu0
      %829 = vmatprep.mubr.bf16.mxu0 0
      %830 = vmatmul.mubr.bf16.gmra.mrb[0].mxu0 %v668
      %v831 = vpop.f32.mrb[0].mxu0
      %v832 = vadd.f32 %v699, %v831
      %v833 = vpop.f32.mrb[0].mxu0
      %v834 = vpop.f32.mrb[0].mxu0
      %v835 = vadd.f32 %v699, %v834
      %v836 = vpop.f32.mrb[0].mxu0
      %837 = vmatprep.mubr.bf16.mxu0 0
      %838 = vmatmul.mubr.bf16.gmra.mrb[0].mxu0 %v669
      %v839 = vpop.f32.mrb[0].mxu0
      %v840 = vadd.f32 %v699, %v839
      %v841 = vpop.f32.mrb[0].mxu0
      %v842 = vpop.f32.mrb[0].mxu0
      %v843 = vadd.f32 %v699, %v842
      %v844 = vpop.f32.mrb[0].mxu0
      %845 = vmatprep.mubr.bf16.mxu0 0
      %846 = vmatmul.mubr.bf16.gmra.mrb[0].mxu0 %v670
      %v847 = vpop.f32.mrb[0].mxu0
      %v848 = vadd.f32 %v699, %v847
      %v849 = vpop.f32.mrb[0].mxu0
      %v850 = vpop.f32.mrb[0].mxu0
      %v851 = vadd.f32 %v699, %v850
      %v852 = vpop.f32.mrb[0].mxu0
      %853 = vmatprep.mubr.bf16.mxu0 0
      %854 = vmatmul.mubr.bf16.gmra.mrb[0].mxu0 %v671
      %v855 = vpop.f32.mrb[0].mxu0
      %v856 = vadd.f32 %v699, %v855
      %v857 = vpop.f32.mrb[0].mxu0
      %v858 = vpop.f32.mrb[0].mxu0
      %v859 = vadd.f32 %v699, %v858
      %v860 = vpop.f32.mrb[0].mxu0
      %861 = vmatprep.mubr.bf16.mxu0 0
      %862 = vmatmul.mubr.bf16.gmra.mrb[0].mxu0 %v672
      %v863 = vpop.f32.mrb[0].mxu0
      %v864 = vadd.f32 %v699, %v863
      %v865 = vpop.f32.mrb[0].mxu0
      %v866 = vpop.f32.mrb[0].mxu0
      %v867 = vadd.f32 %v699, %v866
      %v868 = vpop.f32.mrb[0].mxu0
      %869 = vmatprep.mubr.bf16.mxu0 0
      %870 = vmatmul.mubr.bf16.gmra.mrb[0].mxu0 %v673
      %v871 = vpop.f32.mrb[0].mxu0
      %v872 = vadd.f32 %v699, %v871
      %v873 = vpop.f32.mrb[0].mxu0
      %v874 = vpop.f32.mrb[0].mxu0
      %v875 = vadd.f32 %v699, %v874
      %v876 = vpop.f32.mrb[0].mxu0
      %877 = vmatprep.mubr.bf16.mxu0 0
      %878 = vmatmul.mubr.bf16.gmra.mrb[0].mxu0 %v674
      %v879 = vpop.f32.mrb[0].mxu0
      %v880 = vadd.f32 %v699, %v879
      %v881 = vpop.f32.mrb[0].mxu0
      %v882 = vpop.f32.mrb[0].mxu0
      %v883 = vadd.f32 %v699, %v882
      %v884 = vpop.f32.mrb[0].mxu0
      %885 = vmatprep.mubr.bf16.mxu0 0
      %886 = vmatmul.mubr.bf16.gmra.mrb[0].mxu0 %v675
      %v887 = vpop.f32.mrb[0].mxu0
      %v888 = vadd.f32 %v699, %v887
      %v889 = vpop.f32.mrb[0].mxu0
      %v890 = vpop.f32.mrb[0].mxu0
      %v891 = vadd.f32 %v699, %v890
      %v892 = vpop.f32.mrb[0].mxu0
      %893 = vmatprep.mubr.bf16.mxu0 0
      %894 = vmatmul.mubr.bf16.gmra.mrb[0].mxu0 %v676
      %v895 = vpop.f32.mrb[0].mxu0
      %v896 = vadd.f32 %v699, %v895
      %v897 = vpop.f32.mrb[0].mxu0
      %v898 = vpop.f32.mrb[0].mxu0
      %v899 = vadd.f32 %v699, %v898
      %v900 = vpop.f32.mrb[0].mxu0
      %901 = vmatprep.mubr.bf16.mxu0 0
      %902 = vmatmul.mubr.bf16.gmra.mrb[0].mxu0 %v677
      %v903 = vpop.f32.mrb[0].mxu0
      %v904 = vadd.f32 %v699, %v903
      %v905 = vpop.f32.mrb[0].mxu0
      %v906 = vpop.f32.mrb[0].mxu0
      %v907 = vadd.f32 %v699, %v906
      %v908 = vpop.f32.mrb[0].mxu0
      %909 = vdwg.mxu0
      %910 = vst [vmem:[%s261] sm:$0xff] %v630
      %911 = vst [vmem:[%s261 + $0x8] sm:$0xff] %v631
      %912 = vst [vmem:[%s261 + $0x10] sm:$0xff] %v632
      %913 = vst [vmem:[%s261 + $0x18] sm:$0xff] %v633
      %914 = vst [vmem:[%s261 + $0x20] sm:$0xff] %v634
      %915 = vst [vmem:[%s261 + $0x28] sm:$0xff] %v635
      %916 = vst [vmem:[%s261 + $0x30] sm:$0xff] %v636
      %917 = vst [vmem:[%s261 + $0x38] sm:$0xff] %v637
      %918 = vst [vmem:[%s261 + $0x40] sm:$0xff] %v638
      %919 = vst [vmem:[%s261 + $0x48] sm:$0xff] %v639
      %920 = vst [vmem:[%s261 + $0x50] sm:$0xff] %v640
      %921 = vst [vmem:[%s261 + $0x58] sm:$0xff] %v641
      %922 = vst [vmem:[%s261 + $0x60] sm:$0xff] %v642
      %923 = vst [vmem:[%s261 + $0x68] sm:$0xff] %v643
      %924 = vst [vmem:[%s261 + $0x70] sm:$0xff] %v644
      %925 = vst [vmem:[%s261 + $0x78] sm:$0xff] %v645
      %926 = vst [vmem:[%s261 + $0x80] sm:$0xff] %v646
      %927 = vst [vmem:[%s261 + $0x88] sm:$0xff] %v647
      %928 = vst [vmem:[%s261 + $0x90] sm:$0xff] %v648
      %929 = vst [vmem:[%s261 + $0x98] sm:$0xff] %v649
      %930 = vst [vmem:[%s261 + $0xa0] sm:$0xff] %v650
      %931 = vst [vmem:[%s261 + $0xa8] sm:$0xff] %v651
      %932 = vst [vmem:[%s261 + $0xb0] sm:$0xff] %v652
      %933 = vst [vmem:[%s261 + $0xb8] sm:$0xff] %v653
      %934 = vst [vmem:[%s261 + $0xc0] sm:$0xff] %v654
      %935 = vst [vmem:[%s261 + $0xc8] sm:$0xff] %v655
      %936 = vst [vmem:[%s261 + $0xd0] sm:$0xff] %v656
      %937 = vst [vmem:[%s261 + $0xd8] sm:$0xff] %v657
      %938 = vst [vmem:[%s261 + $0xe0] sm:$0xff] %v658
      %939 = vst [vmem:[%s261 + $0xe8] sm:$0xff] %v659
      %940 = vst [vmem:[%s261 + $0xf0] sm:$0xff] %v660
      %941 = vst [vmem:[%s261 + $0xf8] sm:$0xff] %v661
      %942 = vst [vmem:[%s267] sm:$0xff] %v784
      %943 = vst [vmem:[%s267 + $0x8] sm:$0xff] %v787
      %944 = vst [vmem:[%s267 + $0x10] sm:$0xff] %v792
      %945 = vst [vmem:[%s267 + $0x18] sm:$0xff] %v795
      %946 = vst [vmem:[%s267 + $0x20] sm:$0xff] %v800
      %947 = vst [vmem:[%s267 + $0x28] sm:$0xff] %v803
      %948 = vst [vmem:[%s267 + $0x30] sm:$0xff] %v808
      %949 = vst [vmem:[%s267 + $0x38] sm:$0xff] %v811
      %950 = vst [vmem:[%s267 + $0x40] sm:$0xff] %v816
      %951 = vst [vmem:[%s267 + $0x48] sm:$0xff] %v819
      %952 = vst [vmem:[%s267 + $0x50] sm:$0xff] %v824
      %953 = vst [vmem:[%s267 + $0x58] sm:$0xff] %v827
      %954 = vst [vmem:[%s267 + $0x60] sm:$0xff] %v832
      %955 = vst [vmem:[%s267 + $0x68] sm:$0xff] %v835
      %956 = vst [vmem:[%s267 + $0x70] sm:$0xff] %v840
      %957 = vst [vmem:[%s267 + $0x78] sm:$0xff] %v843
      %958 = vst [vmem:[%s267 + $0x80] sm:$0xff] %v848
      %959 = vst [vmem:[%s267 + $0x88] sm:$0xff] %v851
      %960 = vst [vmem:[%s267 + $0x90] sm:$0xff] %v856
      %961 = vst [vmem:[%s267 + $0x98] sm:$0xff] %v859
      %962 = vst [vmem:[%s267 + $0xa0] sm:$0xff] %v864
      %963 = vst [vmem:[%s267 + $0xa8] sm:$0xff] %v867
      %964 = vst [vmem:[%s267 + $0xb0] sm:$0xff] %v872
      %965 = vst [vmem:[%s267 + $0xb8] sm:$0xff] %v875
      %966 = vst [vmem:[%s267 + $0xc0] sm:$0xff] %v880
      %967 = vst [vmem:[%s267 + $0xc8] sm:$0xff] %v883
      %968 = vst [vmem:[%s267 + $0xd0] sm:$0xff] %v888
      %969 = vst [vmem:[%s267 + $0xd8] sm:$0xff] %v891
      %970 = vst [vmem:[%s267 + $0xe0] sm:$0xff] %v896
      %971 = vst [vmem:[%s267 + $0xe8] sm:$0xff] %v899
      %972 = vst [vmem:[%s267 + $0xf0] sm:$0xff] %v904
      %973 = vst [vmem:[%s267 + $0xf8] sm:$0xff] %v907
      %s974 = smul.u32 32, %s18
      %p975 = scmp.lt.s32.totalorder %s974, 63
      %s976 = scalar_select %p975, %s974, 63
      %s977 = smul.addr %s976, 8
      %s978 = scalar_lea.vmem %s5, %s977
      %s979 = smul.u32 32, %s18
      %p980 = scmp.lt.s32.totalorder %s979, 63
      %s981 = scalar_select %p980, %s979, 63
      %s982 = smul.addr %s981, 8
      %s983 = scalar_lea.vmem %s6, %s982
      // Predicated region
      $region41: #{stanosa_forward.1} parent=39 // pred_check
        %p984 = pneg %p146
      $region42: #{stanosa_forward.1} parent=39 // pred_check_branch
        %986 = sbr.rel (%p984) target = $region44
      $region43: #{stanosa_forward.1} parent=39 // pred_region
        %s987 = smul.u32 32, %s18
      $region44: #{stanosa_forward.1} parent=39 // pred_fallthru
        _
      // Predicated region
      $region45: #{stanosa_forward.1} parent=39 // pred_check
        %p988 = pneg %p172
      $region46: #{stanosa_forward.1} parent=39 // pred_check_branch
        %990 = sbr.rel (%p988) target = $region48
      $region47: #{stanosa_forward.1} parent=39 // pred_region
        %s991 = smul.u32 32, %s18
      $region48: #{stanosa_forward.1} parent=39 // pred_fallthru
        _
    $region40: #{stanosa_forward.1} parent=5 // pred_fallthru
      _
    %p992 = scmp.le.s32.totalorder 2, %s13
    // Predicated region
    $region49: #{stanosa_forward.1} parent=5 // pred_check
      %p993 = pneg %p992
    $region50: #{stanosa_forward.1} parent=5 // pred_check_branch
      %995 = sbr.rel (%p993) target = $region52
    $region51: #{stanosa_forward.1} parent=5 // pred_region
      %s996 = ssub.s32 %s13, 2
      // Predicated region
      $region53: #{stanosa_forward.1} parent=51 // pred_check
        %p997 = pneg %p152
      $region54: #{stanosa_forward.1} parent=51 // pred_check_branch
        %999 = sbr.rel (%p997) target = $region56
      $region55: #{stanosa_forward.1} parent=51 // pred_region
        %s1000 = smul.u32 32, %s19
        %p1001 = scmp.lt.s32.totalorder %s1000, 63
        %s1002 = scalar_select %p1001, %s1000, 63
        %s1003 = smul.addr %s1002, 8
        %s1004 = scalar_lea.vmem %s5, %s1003
      $region56: #{stanosa_forward.1} parent=51 // pred_fallthru
        _
      // Predicated region
      $region57: #{stanosa_forward.1} parent=51 // pred_check
        %p1005 = pneg %p178
      $region58: #{stanosa_forward.1} parent=51 // pred_check_branch
        %1007 = sbr.rel (%p1005) target = $region60
      $region59: #{stanosa_forward.1} parent=51 // pred_region
        %s1008 = smul.u32 32, %s19
        %p1009 = scmp.lt.s32.totalorder %s1008, 63
        %s1010 = scalar_select %p1009, %s1008, 63
        %s1011 = smul.addr %s1010, 8
        %s1012 = scalar_lea.vmem %s6, %s1011
      $region60: #{stanosa_forward.1} parent=51 // pred_fallthru
        _
    $region52: #{stanosa_forward.1} parent=5 // pred_fallthru
      _
  $region6: #{stanosa_forward.1} parent=0 // loop_footer
    %s17 = sadd.s32 1, %s13
  $region7: #{stanosa_forward.1} parent=0 // loop_footer_branch
    %12 = sbr.rel target = $region3
  $region8: #{stanosa_forward.1} parent=0 // loop_exit
    _

</llo_original>
